<compile_context>
chip_gen: v7x
topology: tpu7x:2x2x1
jax: 0.10.0
libtpu: 0.0.40
codegen_flags: <defaults>
</compile_context>

<pallas_src>
import functools

import jax
import jax.numpy as jnp
from jax.experimental import pallas as pl
from jax.experimental.pallas import tpu as pltpu


# ----------------------------- kernel-side numerics helpers -----------------------------

def _sigmoid(x):
    # exp on the EUP + approx reciprocal (EUP slot) instead of a true divide.
    return pl.reciprocal(1.0 + jnp.exp(-x), approx=True)


def _softmax(x, axis):
    m = jnp.max(x, axis=axis, keepdims=True)
    e = jnp.exp(x - m)
    return e * pl.reciprocal(jnp.sum(e, axis=axis, keepdims=True), approx=True)


def _log_softmax(x, axis):
    s = x - jnp.max(x, axis=axis, keepdims=True)
    return s - jnp.log(jnp.sum(jnp.exp(s), axis=axis, keepdims=True))


# ----------------------------- fused SLSTM kernel -----------------------------

def _slstm_fused_kernel(
    window,
    # per-batch-tile inputs
    hh0_ref, cs0_ref, sv0_ref, sc0_ref, wv_ref,
    # packed sentence-gate weight [lin_fg | lin_og | wfgi_g] over rows [sv ; avg_hh]
    sent_pack_w_ref, lin_fg_b_ref, lin_og_b_ref, fgi_b_ref,
    # packed word-gate weight: rows [hs_before ; hs_after ; hh], cols [7H gates | wfgi_h]
    wg_pack_w_ref, wg_wv_ref, word_sent_w_ref, gate_b_ref,
    # classifier head: packed W_1 over rows [avg_hh ; sent_vec]
    w1_pack_w_ref, w1_b_ref, cls_w_ref, cls_b_ref,
    # outputs (written only on the last layer step)
    logp_ref, sent_ref,
    # VMEM scratch carried across the layer grid axis
    hh_s, cs_s, sv_s, sc_s, wvg_s,
):
    layer = pl.program_id(1)
    n_layers = pl.num_programs(1)
    Bt, S, H = hh_s.shape
    f32 = jnp.float32
    bf16 = jnp.bfloat16

    def dot_w(x, w_ref):
        # bf16 MXU operands, f32 accumulation (matmul-only bf16; elementwise stays f32).
        return jnp.dot(x.astype(bf16), w_ref[...], preferred_element_type=f32)

    # ---- layer step 0: load recurrent state, precompute the layer-invariant wv term ----
    @pl.when(layer == 0)
    def _init():
        hh_s[...] = hh0_ref[...]
        cs_s[...] = cs0_ref[...]
        sv_s[...] = sv0_ref[...]
        sc_s[...] = sc0_ref[...]
        wv2 = wv_ref[...].reshape(Bt * S, H)
        wvg_s[...] = dot_w(wv2, wg_wv_ref).reshape(Bt, S, 7 * H).astype(bf16)

    hh = hh_s[...]
    cs = cs_s[...]
    sv = sv_s[...]
    sc = sc_s[...]

    # ---- windowed neighbour sums: XLU rolls + masks (no (S,S) band, no MXU FLOPs) ----
    pos = jax.lax.broadcasted_iota(jnp.int32, (1, S, 1), 1)

    def window_sums(x):
        before = jnp.zeros_like(x)
        after = jnp.zeros_like(x)
        for k in range(1, window + 1):
            if k >= S:          # reference returns all-zeros when the shift exceeds S
                continue
            rb = pltpu.roll(x, shift=k, axis=1)        # rb[t] = x[t-k] (wrapped)
            before = before + jnp.where(pos >= k, rb, 0.0)
            ra = pltpu.roll(x, shift=S - k, axis=1)    # ra[t] = x[t+k] (wrapped)
            after = after + jnp.where(pos < S - k, ra, 0.0)
        return before, after

    hs_before, hs_after = window_sums(hh)
    cs_before, cs_after = window_sums(cs)

    # ---- ONE fused word-level matmul: [hs_before|hs_after|hh] @ [wg(7H) | wfgi_h(H)] ----
    x3 = jnp.concatenate([hs_before, hs_after, hh], axis=2).reshape(Bt * S, 3 * H)
    big = dot_w(x3, wg_pack_w_ref).reshape(Bt, S, 8 * H)
    g_words = big[:, :, 7 * H:]                       # W_f_hat_g_i_h(hh)

    # ---- ONE fused sentence-level matmul: [sv | avg_hh] @ [lin_fg | lin_og | wfgi_g] ----
    avg_hh = jnp.mean(hh, axis=1)                     # (Bt, H)
    x2 = jnp.concatenate([sv, avg_hh], axis=1)        # (Bt, 2H)
    g3 = dot_w(x2, sent_pack_w_ref)                   # (Bt, 3H)
    f_hat_g = _sigmoid(g3[:, :H] + lin_fg_b_ref[...])
    out_g = _sigmoid(g3[:, H:2 * H] + lin_og_b_ref[...])
    g_sent = g3[:, 2 * H:]                            # W_f_hat_g_i_g(sv)

    f_hat_g_i = _sigmoid(g_sent[:, None, :] + g_words + fgi_b_ref[...])
    g_soft = _softmax(f_hat_g_i, axis=2)
    f_i_g = jnp.sum(g_soft * cs, axis=1)              # (Bt, H)
    new_sc = _softmax(f_hat_g, axis=1) * sc + f_i_g
    new_sv = out_g * jnp.tanh(new_sc)

    # ---- word-level gates: one fused pre-activation add, then bulk activations ----
    sent_gates = dot_w(new_sv, word_sent_w_ref)       # (Bt, 7H)
    pre = (big[:, :, :7 * H] + wvg_s[...].astype(f32)
           + sent_gates[:, None, :] + gate_b_ref[...])

    sig = _sigmoid(pre[:, :, :6 * H])                 # i, l, r, f, s, output in one pass
    u_gate = jnp.tanh(pre[:, :, 6 * H:])
    output_gate = sig[:, :, 5 * H:6 * H]
    # Reference semantics: softmax over the *concatenated* 5H gate vector (dim=2).
    mix = _softmax(sig[:, :, :5 * H], axis=2)
    i_t = mix[:, :, 0 * H:1 * H]
    l_t = mix[:, :, 1 * H:2 * H]
    r_t = mix[:, :, 2 * H:3 * H]
    f_t = mix[:, :, 3 * H:4 * H]
    s_t = mix[:, :, 4 * H:5 * H]

    new_cell = (l_t * cs_before + f_t * cs + r_t * cs_after
                + s_t * sc[:, None, :] + i_t * u_gate)
    new_hh = output_gate * jnp.tanh(new_cell)

    hh_s[...] = new_hh
    cs_s[...] = new_cell
    sv_s[...] = new_sv
    sc_s[...] = new_sc

    # ---- classifier head fused into the final layer step ----
    @pl.when(layer == n_layers - 1)
    def _head():
        avg_out = jnp.mean(new_hh, axis=1)
        xh = jnp.concatenate([avg_out, new_sv], axis=1)       # (Bt, 2H)
        h = dot_w(xh, w1_pack_w_ref) + w1_b_ref[...]
        logits = dot_w(h, cls_w_ref) + cls_b_ref[...]
        logp_ref[...] = _log_softmax(logits, axis=1)
        sent_ref[...] = new_sv


# ----------------------------- wrapper: grid / specs / tiling -----------------------------

def _per_row_vmem_bytes(S, H):
    """Rough per-batch-row VMEM bytes: double-buffered input tiles, state scratch,
    bf16 wv-gate scratch and the in-kernel f32 temporaries (hs/cs shifts, 3H concat,
    8H matmul output, 7H pre-activations, 6H sigmoid, 5H softmax)."""
    units = (2 * 3        # double-buffered hh0 / cs0 / wv input tiles
             + 2          # hh / cs f32 state scratch
             + 3.5        # bf16 (S,7H) wv-gate scratch
             + 4          # hs/cs before/after temporaries
             + 4.5        # 3H concat (+ bf16 copy)
             + 8 + 7 + 6 + 5)   # big / pre / sig / mix temporaries
    return int(4 * S * H * units)


def _pick_batch_tile(B, S, H, vmem_budget_bytes, min_tiles=1):
    """Largest legal batch tile whose working set fits the VMEM budget.

    Tiles smaller than B need Bt % 8 == 0 so the 2-D (B, H)/(B, C) blocks stay
    sublane-legal; small or odd batches fall back to a single full-batch tile.
    """
    if B <= 8 or B % 8 != 0:
        return B
    per_row = _per_row_vmem_bytes(S, H)
    bt = int(vmem_budget_bytes // max(per_row, 1)) // 8 * 8
    bt = max(8, min(B, bt))
    if min_tiles > 1:                       # e.g. v7x: feed both TensorCores
        cap = (B // min_tiles) // 8 * 8
        if cap >= 8:
            bt = min(bt, cap)
    while B % bt:
        bt -= 8
    return bt


def _cost_estimate(B, S, H, C, num_layers):
    mm_layer = (B * S * 3 * H * 8 * H      # fused word-gate matmul
                + B * 2 * H * 3 * H        # fused sentence-gate matmul
                + B * H * 7 * H)           # word-sentence gate
    mm_once = B * S * H * 7 * H + B * (2 * H * H + H * C)
    flops = 2 * (num_layers * mm_layer + mm_once)
    transcendentals = num_layers * (15 * B * S * H + 5 * B * H) + 2 * B * C
    weight_bytes = 2 * (46 * H * H + H * C) + 4 * (11 * H + C)
    state_bytes = 4 * (3 * B * S * H + 2 * B * H + B * C)
    return pl.CostEstimate(flops=int(flops), transcendentals=int(transcendentals),
                           bytes_accessed=int(state_bytes + weight_bytes))


def slstm_fused(params, hh0, cs0, sv0, sc0, wv, *, num_layers, window,
                num_classes, vmem_budget_bytes=64 * 1024 * 1024, min_batch_tiles=1):
    """All num_layers slstm_steps + classifier head in one pallas_call."""
    B, S, H = hh0.shape
    C = num_classes
    # NOTE: on v7x (64 MiB physical VMEM per TC, 2 TCs) pass vmem_budget_bytes≈40 MiB
    # and min_batch_tiles=2 so the "parallel" batch axis feeds both TensorCores.
    Bt = _pick_batch_tile(B, S, H, vmem_budget_bytes, min_tiles=min_batch_tiles)
    grid = (B // Bt, num_layers)

    f32 = jnp.float32
    bf = lambda x: x.astype(jnp.bfloat16)
    fp = lambda k: params[k].astype(f32)
    zHH = jnp.zeros((H, H), f32)

    # Packed word-gate weight: rows [hs_before ; hs_after ; hh], cols [7H gates | wfgi_h].
    wg_pack = bf(jnp.concatenate([
        jnp.concatenate([params["wg_before"], zHH], axis=1),
        jnp.concatenate([params["wg_after"], zHH], axis=1),
        jnp.concatenate([params["wg_hh"], params["wfgi_h"]], axis=1)], axis=0))
    # Packed sentence-gate weight: rows [sv ; avg_hh], cols [lin_fg | lin_og | wfgi_g].
    sent_pack = bf(jnp.concatenate([
        jnp.concatenate([params["lin_fg_w_sv"], params["lin_og_w_sv"],
                         params["wfgi_g"]], axis=1),
        jnp.concatenate([params["lin_fg_w_avg"], params["lin_og_w_avg"], zHH],
                        axis=1)], axis=0))
    # Packed head W_1: rows [avg_hh ; sent_vec].
    w1_pack = bf(jnp.concatenate([params["w1_avg"], params["w1_sv"]], axis=0))

    args = (
        hh0, cs0, sv0, sc0, wv,
        sent_pack, fp("lin_fg_b"), fp("lin_og_b"), fp("fgi_b"),
        wg_pack, bf(params["wg_wv"]), bf(params["word_sent_w"]), fp("gate_b"),
        w1_pack, fp("w1_b"), bf(params["cls_w"]), fp("cls_b"),
    )

    def tiled3(shape):
        return pl.BlockSpec(shape, lambda b, l: (b, 0, 0))

    def tiled2(shape):
        return pl.BlockSpec(shape, lambda b, l: (b, 0))

    def resident(shape):
        # Block index constant over the whole grid -> DMA'd into VMEM exactly once.
        return pl.BlockSpec(shape, lambda b, l: (0, 0))

    in_specs = (
        [tiled3((Bt, S, H)), tiled3((Bt, S, H)), tiled2((Bt, H)), tiled2((Bt, H)),
         tiled3((Bt, S, H))]
        + [resident(a.shape) for a in args[5:]]
    )
    out_specs = (tiled2((Bt, C)), tiled2((Bt, H)))
    out_shape = (jax.ShapeDtypeStruct((B, C), f32),
                 jax.ShapeDtypeStruct((B, H), f32))

    scratch_shapes = [
        pltpu.VMEM((Bt, S, H), f32),                 # hh carry across layers
        pltpu.VMEM((Bt, S, H), f32),                 # cs carry
        pltpu.VMEM((Bt, H), f32),                    # sentence vector carry
        pltpu.VMEM((Bt, H), f32),                    # sentence cell carry
        pltpu.VMEM((Bt, S, 7 * H), jnp.bfloat16),    # layer-invariant wv @ W_wv (bf16)
    ]

    # VMEM limit derived from the actual working set (32 MiB floor, 100 MiB cap).
    weight_bytes = 2 * (46 * H * H + H * C) + 4 * (11 * H + C)
    est = weight_bytes + _per_row_vmem_bytes(S, H) * Bt + (2 << 20)
    vmem_limit = int(min(100 * 1024 * 1024, max(32 * 1024 * 1024, est)))

    return pl.pallas_call(
        functools.partial(_slstm_fused_kernel, window),
        out_shape=out_shape,
        grid_spec=pltpu.PrefetchScalarGridSpec(
            num_scalar_prefetch=0,
            grid=grid,
            in_specs=in_specs,
            out_specs=out_specs,
            scratch_shapes=scratch_shapes),
        compiler_params=pltpu.CompilerParams(
            dimension_semantics=("parallel", "arbitrary"),
            vmem_limit_bytes=vmem_limit),
        cost_estimate=_cost_estimate(B, S, H, C, num_layers),
    )(*args)


# ----------------------------- full forward (glue + fused kernel) -----------------------------

@functools.partial(jax.jit, static_argnames=("num_layers", "window", "num_classes"))
def slstm_forward(params, input_sentences, sentences_length, *, num_layers,
                  window, num_classes, rng_key):
    # sentences_length is unused by the reference forward as well.
    del sentences_length
    word_vectors = params["embed"][input_sentences]             # (B, S, H) gather (glue)
    k1, k2 = jax.random.split(rng_key)
    # Reference forward draws hh/cs ~ Uniform[-0.05, 0.05).
    hh0 = jax.random.uniform(k1, word_vectors.shape, jnp.float32, -0.05, 0.05)
    cs0 = jax.random.uniform(k2, word_vectors.shape, jnp.float32, -0.05, 0.05)
    sv0 = jnp.mean(hh0, axis=1)
    sc0 = jnp.mean(cs0, axis=1)
    logp, sent_vec = slstm_fused(params, hh0, cs0, sv0, sc0, word_vectors,
                                 num_layers=num_layers, window=window,
                                 num_classes=num_classes)
    return logp, sent_vec, None


# ----------------------------- deterministic parameter init -----------------------------

def init_params(key, hidden_size, input_dim, num_classes, vocab_size):
    # Reference init: every parameter ~ N(0, 0.1); concatenated-input Linears are stored
    # pre-split into per-operand weight blocks (equivalent random init, concat-free kernel).
    assert input_dim == hidden_size, "reference word_gates is Linear(4H, 7H) => input_dim == H"
    H = hidden_size
    ks = iter(jax.random.split(key, 32))
    n = lambda shape: (0.1 * jax.random.normal(next(ks), shape)).astype(jnp.float32)
    return {
        "embed": n((vocab_size, input_dim)),
        # lin_f_hat_g / lin_output_gate_g input order: [sentence_vector, avg_hh]
        "lin_fg_w_sv": n((H, H)), "lin_fg_w_avg": n((H, H)), "lin_fg_b": n((1, H)),
        "lin_og_w_sv": n((H, H)), "lin_og_w_avg": n((H, H)), "lin_og_b": n((1, H)),
        "wfgi_g": n((H, H)), "wfgi_h": n((H, H)), "fgi_b": n((1, H)),
        # word_gates input order: [hs_before, hs_after, hh, wv] -> 7H outputs
        "wg_before": n((H, 7 * H)), "wg_after": n((H, 7 * H)),
        "wg_hh": n((H, 7 * H)), "wg_wv": n((H, 7 * H)),
        "word_sent_w": n((H, 7 * H)),
        # gate bias order: i_hat, l_hat, r_hat, f_hat, s_hat, output_gate, u_gate
        "gate_b": n((1, 7 * H)),
        # W_1 input order: [avg_hh, sent_vec]
        "w1_avg": n((H, H)), "w1_sv": n((H, H)), "w1_b": n((1, H)),
        "cls_w": n((H, num_classes)), "cls_b": n((1, num_classes)),
    }


if __name__ == "__main__":
    B, S, H = 2, 8, 32
    input_dim = H            # reference word_gates = Linear(4H, 7H)  =>  input_dim == H
    num_layers = 2
    window = 2
    num_classes = 4
    vocab_size = 50

    key = jax.random.PRNGKey(0)
    k_params, k_data, k_state = jax.random.split(key, 3)

    params = init_params(k_params, H, input_dim, num_classes, vocab_size)
    input_sentences = jax.random.randint(k_data, (B, S), 0, vocab_size, dtype=jnp.int32)
    sentences_length = jnp.full((B,), S, dtype=jnp.int32)

    log_softmax, sent_vec, _ = slstm_forward(
        params, input_sentences, sentences_length,
        num_layers=num_layers, window=window,
        num_classes=num_classes, rng_key=k_state)

    jax.block_until_ready((log_softmax, sent_vec))
    assert log_softmax.shape == (B, num_classes)
    assert sent_vec.shape == (B, H)
    assert bool(jnp.all(jnp.isfinite(log_softmax)))
    prob_sums = jnp.sum(jnp.exp(log_softmax), axis=1)
    assert bool(jnp.all(jnp.abs(prob_sums - 1.0) < 1e-3))
    print("KERNEL_OK")
</pallas_src>

<mosaic_0001>
module attributes {stable_mosaic.version = 11 : i64} {
  func.func @_slstm_fused_kernel(%arg0: i32, %arg1: i32, %arg2: memref<2x8x32xf32, #tpu.memory_space<vmem>>, %arg3: memref<2x8x32xf32, #tpu.memory_space<vmem>>, %arg4: memref<2x32xf32, #tpu.memory_space<vmem>>, %arg5: memref<2x32xf32, #tpu.memory_space<vmem>>, %arg6: memref<2x8x32xf32, #tpu.memory_space<vmem>>, %arg7: memref<64x96xbf16, #tpu.memory_space<vmem>>, %arg8: memref<1x32xf32, #tpu.memory_space<vmem>>, %arg9: memref<1x32xf32, #tpu.memory_space<vmem>>, %arg10: memref<1x32xf32, #tpu.memory_space<vmem>>, %arg11: memref<96x256xbf16, #tpu.memory_space<vmem>>, %arg12: memref<32x224xbf16, #tpu.memory_space<vmem>>, %arg13: memref<32x224xbf16, #tpu.memory_space<vmem>>, %arg14: memref<1x224xf32, #tpu.memory_space<vmem>>, %arg15: memref<64x32xbf16, #tpu.memory_space<vmem>>, %arg16: memref<1x32xf32, #tpu.memory_space<vmem>>, %arg17: memref<32x4xbf16, #tpu.memory_space<vmem>>, %arg18: memref<1x4xf32, #tpu.memory_space<vmem>>, %arg19: memref<2x4xf32, #tpu.memory_space<vmem>>, %arg20: memref<2x32xf32, #tpu.memory_space<vmem>>, %arg21: memref<2x8x32xf32, #tpu.memory_space<vmem>>, %arg22: memref<2x8x32xf32, #tpu.memory_space<vmem>>, %arg23: memref<2x32xf32, #tpu.memory_space<vmem>>, %arg24: memref<2x32xf32, #tpu.memory_space<vmem>>, %arg25: memref<2x8x224xbf16, #tpu.memory_space<vmem>>) attributes {dimension_semantics = [#tpu.dimension_semantics<parallel>, #tpu.dimension_semantics<arbitrary>], iteration_bounds = array<i64: 1, 2>, scalar_prefetch = 0 : i64, scratch_operands = 5 : i64, tpu.core_type = #tpu.core_type<tc>, window_params = [{transform_indices = @transform_0, window_bounds = array<i64: 2, 8, 32>}, {transform_indices = @transform_1, window_bounds = array<i64: 2, 8, 32>}, {transform_indices = @transform_2, window_bounds = array<i64: 2, 32>}, {transform_indices = @transform_3, window_bounds = array<i64: 2, 32>}, {transform_indices = @transform_4, window_bounds = array<i64: 2, 8, 32>}, {pipeline_mode = #tpu.pipeline_mode<synchronous>, transform_indices = @transform_5, window_bounds = array<i64: 64, 96>}, {pipeline_mode = #tpu.pipeline_mode<synchronous>, transform_indices = @transform_6, window_bounds = array<i64: 1, 32>}, {pipeline_mode = #tpu.pipeline_mode<synchronous>, transform_indices = @transform_7, window_bounds = array<i64: 1, 32>}, {pipeline_mode = #tpu.pipeline_mode<synchronous>, transform_indices = @transform_8, window_bounds = array<i64: 1, 32>}, {pipeline_mode = #tpu.pipeline_mode<synchronous>, transform_indices = @transform_9, window_bounds = array<i64: 96, 256>}, {pipeline_mode = #tpu.pipeline_mode<synchronous>, transform_indices = @transform_10, window_bounds = array<i64: 32, 224>}, {pipeline_mode = #tpu.pipeline_mode<synchronous>, transform_indices = @transform_11, window_bounds = array<i64: 32, 224>}, {pipeline_mode = #tpu.pipeline_mode<synchronous>, transform_indices = @transform_12, window_bounds = array<i64: 1, 224>}, {pipeline_mode = #tpu.pipeline_mode<synchronous>, transform_indices = @transform_13, window_bounds = array<i64: 64, 32>}, {pipeline_mode = #tpu.pipeline_mode<synchronous>, transform_indices = @transform_14, window_bounds = array<i64: 1, 32>}, {pipeline_mode = #tpu.pipeline_mode<synchronous>, transform_indices = @transform_15, window_bounds = array<i64: 32, 4>}, {pipeline_mode = #tpu.pipeline_mode<synchronous>, transform_indices = @transform_16, window_bounds = array<i64: 1, 4>}, {transform_indices = @transform_17, window_bounds = array<i64: 2, 4>}, {transform_indices = @transform_18, window_bounds = array<i64: 2, 32>}]} {
    %c0_i32 = arith.constant 0 : i32
    %0 = arith.cmpi eq, %arg1, %c0_i32 : i32
    %1 = arith.extui %0 : i1 to i32
    %c0_i32_0 = arith.constant 0 : i32
    %2 = arith.cmpi ne, %1, %c0_i32_0 : i32
    scf.if %2 {
      %c0_82 = arith.constant 0 : index
      %c0_83 = arith.constant 0 : index
      %c0_84 = arith.constant 0 : index
      %210 = vector.load %arg2[%c0_82, %c0_83, %c0_84] : memref<2x8x32xf32, #tpu.memory_space<vmem>>, vector<2x8x32xf32>
      %c0_85 = arith.constant 0 : index
      %c0_86 = arith.constant 0 : index
      %c0_87 = arith.constant 0 : index
      %211 = vector.load %arg21[%c0_85, %c0_86, %c0_87] : memref<2x8x32xf32, #tpu.memory_space<vmem>>, vector<2x8x32xf32>
      tpu.vector_store %arg21[%c0_85, %c0_86, %c0_87], %210 {strides = array<i32>} : memref<2x8x32xf32, #tpu.memory_space<vmem>>, vector<2x8x32xf32>,
      %c0_88 = arith.constant 0 : index
      %c0_89 = arith.constant 0 : index
      %c0_90 = arith.constant 0 : index
      %212 = vector.load %arg3[%c0_88, %c0_89, %c0_90] : memref<2x8x32xf32, #tpu.memory_space<vmem>>, vector<2x8x32xf32>
      %c0_91 = arith.constant 0 : index
      %c0_92 = arith.constant 0 : index
      %c0_93 = arith.constant 0 : index
      %213 = vector.load %arg22[%c0_91, %c0_92, %c0_93] : memref<2x8x32xf32, #tpu.memory_space<vmem>>, vector<2x8x32xf32>
      tpu.vector_store %arg22[%c0_91, %c0_92, %c0_93], %212 {strides = array<i32>} : memref<2x8x32xf32, #tpu.memory_space<vmem>>, vector<2x8x32xf32>,
      %c0_94 = arith.constant 0 : index
      %c0_95 = arith.constant 0 : index
      %214 = vector.load %arg4[%c0_94, %c0_95] : memref<2x32xf32, #tpu.memory_space<vmem>>, vector<2x32xf32>
      %c0_96 = arith.constant 0 : index
      %c0_97 = arith.constant 0 : index
      %215 = vector.load %arg23[%c0_96, %c0_97] : memref<2x32xf32, #tpu.memory_space<vmem>>, vector<2x32xf32>
      tpu.vector_store %arg23[%c0_96, %c0_97], %214 {strides = array<i32>} : memref<2x32xf32, #tpu.memory_space<vmem>>, vector<2x32xf32>,
      %c0_98 = arith.constant 0 : index
      %c0_99 = arith.constant 0 : index
      %216 = vector.load %arg5[%c0_98, %c0_99] : memref<2x32xf32, #tpu.memory_space<vmem>>, vector<2x32xf32>
      %c0_100 = arith.constant 0 : index
      %c0_101 = arith.constant 0 : index
      %217 = vector.load %arg24[%c0_100, %c0_101] : memref<2x32xf32, #tpu.memory_space<vmem>>, vector<2x32xf32>
      tpu.vector_store %arg24[%c0_100, %c0_101], %216 {strides = array<i32>} : memref<2x32xf32, #tpu.memory_space<vmem>>, vector<2x32xf32>,
      %c0_102 = arith.constant 0 : index
      %c0_103 = arith.constant 0 : index
      %c0_104 = arith.constant 0 : index
      %218 = vector.load %arg6[%c0_102, %c0_103, %c0_104] : memref<2x8x32xf32, #tpu.memory_space<vmem>>, vector<2x8x32xf32>
      %219 = vector.shape_cast %218 : vector<2x8x32xf32> to vector<16x32xf32>
      %220 = arith.truncf %219 : vector<16x32xf32> to vector<16x32xbf16>
      %c0_105 = arith.constant 0 : index
      %c0_106 = arith.constant 0 : index
      %221 = vector.load %arg12[%c0_105, %c0_106] : memref<32x224xbf16, #tpu.memory_space<vmem>>, vector<32x224xbf16>
      %cst_107 = arith.constant dense<0.000000e+00> : vector<16x224xf32>
      %222 = tpu.matmul %220, %221, %cst_107 {dimension_numbers = #tpu.dot_dimension_numbers<[1], [0], [0], [1], [0, 0, 1, 1], [], []>} : vector<16x32xbf16>, vector<32x224xbf16>, vector<16x224xf32> -> vector<16x224xf32>
      %223 = vector.shape_cast %222 : vector<16x224xf32> to vector<2x8x224xf32>
      %224 = arith.truncf %223 : vector<2x8x224xf32> to vector<2x8x224xbf16>
      %c0_108 = arith.constant 0 : index
      %c0_109 = arith.constant 0 : index
      %c0_110 = arith.constant 0 : index
      %225 = vector.load %arg25[%c0_108, %c0_109, %c0_110] : memref<2x8x224xbf16, #tpu.memory_space<vmem>>, vector<2x8x224xbf16>
      tpu.vector_store %arg25[%c0_108, %c0_109, %c0_110], %224 {strides = array<i32>} : memref<2x8x224xbf16, #tpu.memory_space<vmem>>, vector<2x8x224xbf16>,
    } else {
    }
    %c0 = arith.constant 0 : index
    %c0_1 = arith.constant 0 : index
    %c0_2 = arith.constant 0 : index
    %3 = vector.load %arg21[%c0, %c0_1, %c0_2] : memref<2x8x32xf32, #tpu.memory_space<vmem>>, vector<2x8x32xf32>
    %c0_3 = arith.constant 0 : index
    %c0_4 = arith.constant 0 : index
    %c0_5 = arith.constant 0 : index
    %4 = vector.load %arg22[%c0_3, %c0_4, %c0_5] : memref<2x8x32xf32, #tpu.memory_space<vmem>>, vector<2x8x32xf32>
    %c0_6 = arith.constant 0 : index
    %c0_7 = arith.constant 0 : index
    %5 = vector.load %arg23[%c0_6, %c0_7] : memref<2x32xf32, #tpu.memory_space<vmem>>, vector<2x32xf32>
    %c0_8 = arith.constant 0 : index
    %c0_9 = arith.constant 0 : index
    %6 = vector.load %arg24[%c0_8, %c0_9] : memref<2x32xf32, #tpu.memory_space<vmem>>, vector<2x32xf32>
    %7 = tpu.iota {dimensions = array<i32: 1>} : vector<1x8x1xi32>
    %cst = arith.constant 0.000000e+00 : f32
    %8 = vector.broadcast %cst : f32 to vector<2x8x32xf32>
    %cst_10 = arith.constant 0.000000e+00 : f32
    %9 = vector.broadcast %cst_10 : f32 to vector<2x8x32xf32>
    %c1_i32 = arith.constant 1 : i32
    %10 = tpu.dynamic_rotate %3 by %c1_i32 dim 1 : vector<2x8x32xf32>, i32 -> vector<2x8x32xf32>
    %c1_i32_11 = arith.constant 1 : i32
    %11 = vector.broadcast %c1_i32_11 : i32 to vector<1x8x1xi32>
    %12 = arith.cmpi sge, %7, %11 : vector<1x8x1xi32>
    %cst_12 = arith.constant 0.000000e+00 : f32
    %13 = vector.shape_cast %12 : vector<1x8x1xi1> to vector<1x8x1xi1>
    %14 = vector.broadcast %13 : vector<1x8x1xi1> to vector<2x8x32xi1>
    %15 = vector.broadcast %cst_12 : f32 to vector<2x8x32xf32>
    %16 = arith.select %14, %10, %15 : vector<2x8x32xi1>, vector<2x8x32xf32>
    %17 = arith.addf %8, %16 : vector<2x8x32xf32>
    %c7_i32 = arith.constant 7 : i32
    %18 = tpu.dynamic_rotate %3 by %c7_i32 dim 1 : vector<2x8x32xf32>, i32 -> vector<2x8x32xf32>
    %c7_i32_13 = arith.constant 7 : i32
    %19 = vector.broadcast %c7_i32_13 : i32 to vector<1x8x1xi32>
    %20 = arith.cmpi slt, %7, %19 : vector<1x8x1xi32>
    %cst_14 = arith.constant 0.000000e+00 : f32
    %21 = vector.shape_cast %20 : vector<1x8x1xi1> to vector<1x8x1xi1>
    %22 = vector.broadcast %21 : vector<1x8x1xi1> to vector<2x8x32xi1>
    %23 = vector.broadcast %cst_14 : f32 to vector<2x8x32xf32>
    %24 = arith.select %22, %18, %23 : vector<2x8x32xi1>, vector<2x8x32xf32>
    %25 = arith.addf %9, %24 : vector<2x8x32xf32>
    %c2_i32 = arith.constant 2 : i32
    %26 = tpu.dynamic_rotate %3 by %c2_i32 dim 1 : vector<2x8x32xf32>, i32 -> vector<2x8x32xf32>
    %c2_i32_15 = arith.constant 2 : i32
    %27 = vector.broadcast %c2_i32_15 : i32 to vector<1x8x1xi32>
    %28 = arith.cmpi sge, %7, %27 : vector<1x8x1xi32>
    %cst_16 = arith.constant 0.000000e+00 : f32
    %29 = vector.shape_cast %28 : vector<1x8x1xi1> to vector<1x8x1xi1>
    %30 = vector.broadcast %29 : vector<1x8x1xi1> to vector<2x8x32xi1>
    %31 = vector.broadcast %cst_16 : f32 to vector<2x8x32xf32>
    %32 = arith.select %30, %26, %31 : vector<2x8x32xi1>, vector<2x8x32xf32>
    %33 = arith.addf %17, %32 : vector<2x8x32xf32>
    %c6_i32 = arith.constant 6 : i32
    %34 = tpu.dynamic_rotate %3 by %c6_i32 dim 1 : vector<2x8x32xf32>, i32 -> vector<2x8x32xf32>
    %c6_i32_17 = arith.constant 6 : i32
    %35 = vector.broadcast %c6_i32_17 : i32 to vector<1x8x1xi32>
    %36 = arith.cmpi slt, %7, %35 : vector<1x8x1xi32>
    %cst_18 = arith.constant 0.000000e+00 : f32
    %37 = vector.shape_cast %36 : vector<1x8x1xi1> to vector<1x8x1xi1>
    %38 = vector.broadcast %37 : vector<1x8x1xi1> to vector<2x8x32xi1>
    %39 = vector.broadcast %cst_18 : f32 to vector<2x8x32xf32>
    %40 = arith.select %38, %34, %39 : vector<2x8x32xi1>, vector<2x8x32xf32>
    %41 = arith.addf %25, %40 : vector<2x8x32xf32>
    %cst_19 = arith.constant 0.000000e+00 : f32
    %42 = vector.broadcast %cst_19 : f32 to vector<2x8x32xf32>
    %cst_20 = arith.constant 0.000000e+00 : f32
    %43 = vector.broadcast %cst_20 : f32 to vector<2x8x32xf32>
    %c1_i32_21 = arith.constant 1 : i32
    %44 = tpu.dynamic_rotate %4 by %c1_i32_21 dim 1 : vector<2x8x32xf32>, i32 -> vector<2x8x32xf32>
    %c1_i32_22 = arith.constant 1 : i32
    %45 = vector.broadcast %c1_i32_22 : i32 to vector<1x8x1xi32>
    %46 = arith.cmpi sge, %7, %45 : vector<1x8x1xi32>
    %cst_23 = arith.constant 0.000000e+00 : f32
    %47 = vector.shape_cast %46 : vector<1x8x1xi1> to vector<1x8x1xi1>
    %48 = vector.broadcast %47 : vector<1x8x1xi1> to vector<2x8x32xi1>
    %49 = vector.broadcast %cst_23 : f32 to vector<2x8x32xf32>
    %50 = arith.select %48, %44, %49 : vector<2x8x32xi1>, vector<2x8x32xf32>
    %51 = arith.addf %42, %50 : vector<2x8x32xf32>
    %c7_i32_24 = arith.constant 7 : i32
    %52 = tpu.dynamic_rotate %4 by %c7_i32_24 dim 1 : vector<2x8x32xf32>, i32 -> vector<2x8x32xf32>
    %c7_i32_25 = arith.constant 7 : i32
    %53 = vector.broadcast %c7_i32_25 : i32 to vector<1x8x1xi32>
    %54 = arith.cmpi slt, %7, %53 : vector<1x8x1xi32>
    %cst_26 = arith.constant 0.000000e+00 : f32
    %55 = vector.shape_cast %54 : vector<1x8x1xi1> to vector<1x8x1xi1>
    %56 = vector.broadcast %55 : vector<1x8x1xi1> to vector<2x8x32xi1>
    %57 = vector.broadcast %cst_26 : f32 to vector<2x8x32xf32>
    %58 = arith.select %56, %52, %57 : vector<2x8x32xi1>, vector<2x8x32xf32>
    %59 = arith.addf %43, %58 : vector<2x8x32xf32>
    %c2_i32_27 = arith.constant 2 : i32
    %60 = tpu.dynamic_rotate %4 by %c2_i32_27 dim 1 : vector<2x8x32xf32>, i32 -> vector<2x8x32xf32>
    %c2_i32_28 = arith.constant 2 : i32
    %61 = vector.broadcast %c2_i32_28 : i32 to vector<1x8x1xi32>
    %62 = arith.cmpi sge, %7, %61 : vector<1x8x1xi32>
    %cst_29 = arith.constant 0.000000e+00 : f32
    %63 = vector.shape_cast %62 : vector<1x8x1xi1> to vector<1x8x1xi1>
    %64 = vector.broadcast %63 : vector<1x8x1xi1> to vector<2x8x32xi1>
    %65 = vector.broadcast %cst_29 : f32 to vector<2x8x32xf32>
    %66 = arith.select %64, %60, %65 : vector<2x8x32xi1>, vector<2x8x32xf32>
    %67 = arith.addf %51, %66 : vector<2x8x32xf32>
    %c6_i32_30 = arith.constant 6 : i32
    %68 = tpu.dynamic_rotate %4 by %c6_i32_30 dim 1 : vector<2x8x32xf32>, i32 -> vector<2x8x32xf32>
    %c6_i32_31 = arith.constant 6 : i32
    %69 = vector.broadcast %c6_i32_31 : i32 to vector<1x8x1xi32>
    %70 = arith.cmpi slt, %7, %69 : vector<1x8x1xi32>
    %cst_32 = arith.constant 0.000000e+00 : f32
    %71 = vector.shape_cast %70 : vector<1x8x1xi1> to vector<1x8x1xi1>
    %72 = vector.broadcast %71 : vector<1x8x1xi1> to vector<2x8x32xi1>
    %73 = vector.broadcast %cst_32 : f32 to vector<2x8x32xf32>
    %74 = arith.select %72, %68, %73 : vector<2x8x32xi1>, vector<2x8x32xf32>
    %75 = arith.addf %59, %74 : vector<2x8x32xf32>
    %76 = tpu.concatenate %33, %41, %3 in 2 : vector<2x8x32xf32>, vector<2x8x32xf32>, vector<2x8x32xf32> -> vector<2x8x96xf32>
    %77 = vector.shape_cast %76 : vector<2x8x96xf32> to vector<16x96xf32>
    %78 = arith.truncf %77 : vector<16x96xf32> to vector<16x96xbf16>
    %c0_33 = arith.constant 0 : index
    %c0_34 = arith.constant 0 : index
    %79 = vector.load %arg11[%c0_33, %c0_34] : memref<96x256xbf16, #tpu.memory_space<vmem>>, vector<96x256xbf16>
    %cst_35 = arith.constant dense<0.000000e+00> : vector<16x256xf32>
    %80 = tpu.matmul %78, %79, %cst_35 {dimension_numbers = #tpu.dot_dimension_numbers<[1], [0], [0], [1], [0, 0, 1, 1], [], []>} : vector<16x96xbf16>, vector<96x256xbf16>, vector<16x256xf32> -> vector<16x256xf32>
    %81 = vector.shape_cast %80 : vector<16x256xf32> to vector<2x8x256xf32>
    %82 = vector.extract_strided_slice %81 {offsets = [0, 0, 224], sizes = [2, 8, 32], strides = [1, 1, 1]} : vector<2x8x256xf32> to vector<2x8x32xf32>
    %cst_36 = arith.constant dense<0.000000e+00> : vector<2x32xf32>
    %83 = vector.multi_reduction <add>, %3, %cst_36 [1] : vector<2x8x32xf32> to vector<2x32xf32>
    %cst_37 = arith.constant 8.000000e+00 : f32
    %84 = vector.broadcast %cst_37 : f32 to vector<2x32xf32>
    %85 = arith.divf %83, %84 : vector<2x32xf32>
    %86 = tpu.concatenate %5, %85 in 1 : vector<2x32xf32>, vector<2x32xf32> -> vector<2x64xf32>
    %87 = arith.truncf %86 : vector<2x64xf32> to vector<2x64xbf16>
    %c0_38 = arith.constant 0 : index
    %c0_39 = arith.constant 0 : index
    %88 = vector.load %arg7[%c0_38, %c0_39] : memref<64x96xbf16, #tpu.memory_space<vmem>>, vector<64x96xbf16>
    %cst_40 = arith.constant dense<0.000000e+00> : vector<2x96xf32>
    %89 = tpu.matmul %87, %88, %cst_40 {dimension_numbers = #tpu.dot_dimension_numbers<[1], [0], [0], [1], [0, 0, 1, 1], [], []>} : vector<2x64xbf16>, vector<64x96xbf16>, vector<2x96xf32> -> vector<2x96xf32>
    %90 = vector.extract_strided_slice %89 {offsets = [0, 0], sizes = [2, 32], strides = [1, 1]} : vector<2x96xf32> to vector<2x32xf32>
    %c0_41 = arith.constant 0 : index
    %c0_42 = arith.constant 0 : index
    %91 = vector.load %arg8[%c0_41, %c0_42] : memref<1x32xf32, #tpu.memory_space<vmem>>, vector<1x32xf32>
    %92 = vector.broadcast %91 : vector<1x32xf32> to vector<2x32xf32>
    %93 = arith.addf %90, %92 : vector<2x32xf32>
    %cst_43 = arith.constant 0.000000e+00 : f32
    %94 = vector.broadcast %cst_43 : f32 to vector<2x32xf32>
    %95 = arith.subf %94, %93 : vector<2x32xf32>
    %96 = math.exp %95 : vector<2x32xf32>
    %cst_44 = arith.constant 1.000000e+00 : f32
    %97 = vector.broadcast %cst_44 : f32 to vector<2x32xf32>
    %98 = arith.addf %97, %96 : vector<2x32xf32>
    %99 = tpu.reciprocal %98 {approx = true} : vector<2x32xf32> -> vector<2x32xf32>
    %100 = vector.extract_strided_slice %89 {offsets = [0, 32], sizes = [2, 32], strides = [1, 1]} : vector<2x96xf32> to vector<2x32xf32>
    %c0_45 = arith.constant 0 : index
    %c0_46 = arith.constant 0 : index
    %101 = vector.load %arg9[%c0_45, %c0_46] : memref<1x32xf32, #tpu.memory_space<vmem>>, vector<1x32xf32>
    %102 = vector.broadcast %101 : vector<1x32xf32> to vector<2x32xf32>
    %103 = arith.addf %100, %102 : vector<2x32xf32>
    %cst_47 = arith.constant 0.000000e+00 : f32
    %104 = vector.broadcast %cst_47 : f32 to vector<2x32xf32>
    %105 = arith.subf %104, %103 : vector<2x32xf32>
    %106 = math.exp %105 : vector<2x32xf32>
    %cst_48 = arith.constant 1.000000e+00 : f32
    %107 = vector.broadcast %cst_48 : f32 to vector<2x32xf32>
    %108 = arith.addf %107, %106 : vector<2x32xf32>
    %109 = tpu.reciprocal %108 {approx = true} : vector<2x32xf32> -> vector<2x32xf32>
    %110 = vector.extract_strided_slice %89 {offsets = [0, 64], sizes = [2, 32], strides = [1, 1]} : vector<2x96xf32> to vector<2x32xf32>
    %111 = vector.shape_cast %110 : vector<2x32xf32> to vector<2x1x32xf32>
    %112 = vector.broadcast %111 : vector<2x1x32xf32> to vector<2x8x32xf32>
    %113 = arith.addf %112, %82 : vector<2x8x32xf32>
    %c0_49 = arith.constant 0 : index
    %c0_50 = arith.constant 0 : index
    %114 = vector.load %arg10[%c0_49, %c0_50] : memref<1x32xf32, #tpu.memory_space<vmem>>, vector<1x32xf32>
    %115 = vector.shape_cast %114 : vector<1x32xf32> to vector<1x1x32xf32>
    %116 = vector.broadcast %115 : vector<1x1x32xf32> to vector<2x8x32xf32>
    %117 = arith.addf %113, %116 : vector<2x8x32xf32>
    %cst_51 = arith.constant 0.000000e+00 : f32
    %118 = vector.broadcast %cst_51 : f32 to vector<2x8x32xf32>
    %119 = arith.subf %118, %117 : vector<2x8x32xf32>
    %120 = math.exp %119 : vector<2x8x32xf32>
    %cst_52 = arith.constant 1.000000e+00 : f32
    %121 = vector.broadcast %cst_52 : f32 to vector<2x8x32xf32>
    %122 = arith.addf %121, %120 : vector<2x8x32xf32>
    %123 = tpu.reciprocal %122 {approx = true} : vector<2x8x32xf32> -> vector<2x8x32xf32>
    %cst_53 = arith.constant dense<0xFF800000> : vector<2x8xf32>
    %124 = vector.multi_reduction <maximumf>, %123, %cst_53 [2] : vector<2x8x32xf32> to vector<2x8xf32>
    %125 = vector.shape_cast %124 : vector<2x8xf32> to vector<2x8x1xf32>
    %126 = vector.broadcast %125 : vector<2x8x1xf32> to vector<2x8x32xf32>
    %127 = arith.subf %123, %126 : vector<2x8x32xf32>
    %128 = math.exp %127 : vector<2x8x32xf32>
    %cst_54 = arith.constant dense<0.000000e+00> : vector<2x8xf32>
    %129 = vector.multi_reduction <add>, %128, %cst_54 [2] : vector<2x8x32xf32> to vector<2x8xf32>
    %130 = vector.shape_cast %129 : vector<2x8xf32> to vector<2x8x1xf32>
    %131 = tpu.reciprocal %130 {approx = true} : vector<2x8x1xf32> -> vector<2x8x1xf32>
    %132 = vector.broadcast %131 : vector<2x8x1xf32> to vector<2x8x32xf32>
    %133 = arith.mulf %128, %132 : vector<2x8x32xf32>
    %134 = arith.mulf %133, %4 : vector<2x8x32xf32>
    %cst_55 = arith.constant dense<0.000000e+00> : vector<2x32xf32>
    %135 = vector.multi_reduction <add>, %134, %cst_55 [1] : vector<2x8x32xf32> to vector<2x32xf32>
    %cst_56 = arith.constant dense<0xFF800000> : vector<2xf32>
    %136 = vector.multi_reduction <maximumf>, %99, %cst_56 [1] : vector<2x32xf32> to vector<2xf32>
    %137 = vector.shape_cast %136 : vector<2xf32> to vector<2x1xf32>
    %138 = vector.broadcast %137 : vector<2x1xf32> to vector<2x32xf32>
    %139 = arith.subf %99, %138 : vector<2x32xf32>
    %140 = math.exp %139 : vector<2x32xf32>
    %cst_57 = arith.constant dense<0.000000e+00> : vector<2xf32>
    %141 = vector.multi_reduction <add>, %140, %cst_57 [1] : vector<2x32xf32> to vector<2xf32>
    %142 = vector.shape_cast %141 : vector<2xf32> to vector<2x1xf32>
    %143 = tpu.reciprocal %142 {approx = true} : vector<2x1xf32> -> vector<2x1xf32>
    %144 = vector.broadcast %143 : vector<2x1xf32> to vector<2x32xf32>
    %145 = arith.mulf %140, %144 : vector<2x32xf32>
    %146 = arith.mulf %145, %6 : vector<2x32xf32>
    %147 = arith.addf %146, %135 : vector<2x32xf32>
    %148 = math.tanh %147 : vector<2x32xf32>
    %149 = arith.mulf %109, %148 : vector<2x32xf32>
    %150 = arith.truncf %149 : vector<2x32xf32> to vector<2x32xbf16>
    %c0_58 = arith.constant 0 : index
    %c0_59 = arith.constant 0 : index
    %151 = vector.load %arg13[%c0_58, %c0_59] : memref<32x224xbf16, #tpu.memory_space<vmem>>, vector<32x224xbf16>
    %cst_60 = arith.constant dense<0.000000e+00> : vector<2x224xf32>
    %152 = tpu.matmul %150, %151, %cst_60 {dimension_numbers = #tpu.dot_dimension_numbers<[1], [0], [0], [1], [0, 0, 1, 1], [], []>} : vector<2x32xbf16>, vector<32x224xbf16>, vector<2x224xf32> -> vector<2x224xf32>
    %153 = vector.extract_strided_slice %81 {offsets = [0, 0, 0], sizes = [2, 8, 224], strides = [1, 1, 1]} : vector<2x8x256xf32> to vector<2x8x224xf32>
    %c0_61 = arith.constant 0 : index
    %c0_62 = arith.constant 0 : index
    %c0_63 = arith.constant 0 : index
    %154 = vector.load %arg25[%c0_61, %c0_62, %c0_63] : memref<2x8x224xbf16, #tpu.memory_space<vmem>>, vector<2x8x224xbf16>
    %155 = arith.extf %154 : vector<2x8x224xbf16> to vector<2x8x224xf32>
    %156 = arith.addf %153, %155 : vector<2x8x224xf32>
    %157 = vector.shape_cast %152 : vector<2x224xf32> to vector<2x1x224xf32>
    %158 = vector.broadcast %157 : vector<2x1x224xf32> to vector<2x8x224xf32>
    %159 = arith.addf %156, %158 : vector<2x8x224xf32>
    %c0_64 = arith.constant 0 : index
    %c0_65 = arith.constant 0 : index
    %160 = vector.load %arg14[%c0_64, %c0_65] : memref<1x224xf32, #tpu.memory_space<vmem>>, vector<1x224xf32>
    %161 = vector.shape_cast %160 : vector<1x224xf32> to vector<1x1x224xf32>
    %162 = vector.broadcast %161 : vector<1x1x224xf32> to vector<2x8x224xf32>
    %163 = arith.addf %159, %162 : vector<2x8x224xf32>
    %164 = vector.extract_strided_slice %163 {offsets = [0, 0, 0], sizes = [2, 8, 192], strides = [1, 1, 1]} : vector<2x8x224xf32> to vector<2x8x192xf32>
    %cst_66 = arith.constant 0.000000e+00 : f32
    %165 = vector.broadcast %cst_66 : f32 to vector<2x8x192xf32>
    %166 = arith.subf %165, %164 : vector<2x8x192xf32>
    %167 = math.exp %166 : vector<2x8x192xf32>
    %cst_67 = arith.constant 1.000000e+00 : f32
    %168 = vector.broadcast %cst_67 : f32 to vector<2x8x192xf32>
    %169 = arith.addf %168, %167 : vector<2x8x192xf32>
    %170 = tpu.reciprocal %169 {approx = true} : vector<2x8x192xf32> -> vector<2x8x192xf32>
    %171 = vector.extract_strided_slice %163 {offsets = [0, 0, 192], sizes = [2, 8, 32], strides = [1, 1, 1]} : vector<2x8x224xf32> to vector<2x8x32xf32>
    %172 = math.tanh %171 : vector<2x8x32xf32>
    %173 = vector.extract_strided_slice %170 {offsets = [0, 0, 160], sizes = [2, 8, 32], strides = [1, 1, 1]} : vector<2x8x192xf32> to vector<2x8x32xf32>
    %174 = vector.extract_strided_slice %170 {offsets = [0, 0, 0], sizes = [2, 8, 160], strides = [1, 1, 1]} : vector<2x8x192xf32> to vector<2x8x160xf32>
    %cst_68 = arith.constant dense<0xFF800000> : vector<2x8xf32>
    %175 = vector.multi_reduction <maximumf>, %174, %cst_68 [2] : vector<2x8x160xf32> to vector<2x8xf32>
    %176 = vector.shape_cast %175 : vector<2x8xf32> to vector<2x8x1xf32>
    %177 = vector.broadcast %176 : vector<2x8x1xf32> to vector<2x8x160xf32>
    %178 = arith.subf %174, %177 : vector<2x8x160xf32>
    %179 = math.exp %178 : vector<2x8x160xf32>
    %cst_69 = arith.constant dense<0.000000e+00> : vector<2x8xf32>
    %180 = vector.multi_reduction <add>, %179, %cst_69 [2] : vector<2x8x160xf32> to vector<2x8xf32>
    %181 = vector.shape_cast %180 : vector<2x8xf32> to vector<2x8x1xf32>
    %182 = tpu.reciprocal %181 {approx = true} : vector<2x8x1xf32> -> vector<2x8x1xf32>
    %183 = vector.broadcast %182 : vector<2x8x1xf32> to vector<2x8x160xf32>
    %184 = arith.mulf %179, %183 : vector<2x8x160xf32>
    %185 = vector.extract_strided_slice %184 {offsets = [0, 0, 0], sizes = [2, 8, 32], strides = [1, 1, 1]} : vector<2x8x160xf32> to vector<2x8x32xf32>
    %186 = vector.extract_strided_slice %184 {offsets = [0, 0, 32], sizes = [2, 8, 32], strides = [1, 1, 1]} : vector<2x8x160xf32> to vector<2x8x32xf32>
    %187 = vector.extract_strided_slice %184 {offsets = [0, 0, 64], sizes = [2, 8, 32], strides = [1, 1, 1]} : vector<2x8x160xf32> to vector<2x8x32xf32>
    %188 = vector.extract_strided_slice %184 {offsets = [0, 0, 96], sizes = [2, 8, 32], strides = [1, 1, 1]} : vector<2x8x160xf32> to vector<2x8x32xf32>
    %189 = vector.extract_strided_slice %184 {offsets = [0, 0, 128], sizes = [2, 8, 32], strides = [1, 1, 1]} : vector<2x8x160xf32> to vector<2x8x32xf32>
    %190 = arith.mulf %186, %67 : vector<2x8x32xf32>
    %191 = arith.mulf %188, %4 : vector<2x8x32xf32>
    %192 = arith.addf %190, %191 : vector<2x8x32xf32>
    %193 = arith.mulf %187, %75 : vector<2x8x32xf32>
    %194 = arith.addf %192, %193 : vector<2x8x32xf32>
    %195 = vector.shape_cast %6 : vector<2x32xf32> to vector<2x1x32xf32>
    %196 = vector.broadcast %195 : vector<2x1x32xf32> to vector<2x8x32xf32>
    %197 = arith.mulf %189, %196 : vector<2x8x32xf32>
    %198 = arith.addf %194, %197 : vector<2x8x32xf32>
    %199 = arith.mulf %185, %172 : vector<2x8x32xf32>
    %200 = arith.addf %198, %199 : vector<2x8x32xf32>
    %201 = math.tanh %200 : vector<2x8x32xf32>
    %202 = arith.mulf %173, %201 : vector<2x8x32xf32>
    %c0_70 = arith.constant 0 : index
    %c0_71 = arith.constant 0 : index
    %c0_72 = arith.constant 0 : index
    %203 = vector.load %arg21[%c0_70, %c0_71, %c0_72] : memref<2x8x32xf32, #tpu.memory_space<vmem>>, vector<2x8x32xf32>
    tpu.vector_store %arg21[%c0_70, %c0_71, %c0_72], %202 {strides = array<i32>} : memref<2x8x32xf32, #tpu.memory_space<vmem>>, vector<2x8x32xf32>,
    %c0_73 = arith.constant 0 : index
    %c0_74 = arith.constant 0 : index
    %c0_75 = arith.constant 0 : index
    %204 = vector.load %arg22[%c0_73, %c0_74, %c0_75] : memref<2x8x32xf32, #tpu.memory_space<vmem>>, vector<2x8x32xf32>
    tpu.vector_store %arg22[%c0_73, %c0_74, %c0_75], %200 {strides = array<i32>} : memref<2x8x32xf32, #tpu.memory_space<vmem>>, vector<2x8x32xf32>,
    %c0_76 = arith.constant 0 : index
    %c0_77 = arith.constant 0 : index
    %205 = vector.load %arg23[%c0_76, %c0_77] : memref<2x32xf32, #tpu.memory_space<vmem>>, vector<2x32xf32>
    tpu.vector_store %arg23[%c0_76, %c0_77], %149 {strides = array<i32>} : memref<2x32xf32, #tpu.memory_space<vmem>>, vector<2x32xf32>,
    %c0_78 = arith.constant 0 : index
    %c0_79 = arith.constant 0 : index
    %206 = vector.load %arg24[%c0_78, %c0_79] : memref<2x32xf32, #tpu.memory_space<vmem>>, vector<2x32xf32>
    tpu.vector_store %arg24[%c0_78, %c0_79], %147 {strides = array<i32>} : memref<2x32xf32, #tpu.memory_space<vmem>>, vector<2x32xf32>,
    %c1_i32_80 = arith.constant 1 : i32
    %207 = arith.cmpi eq, %arg1, %c1_i32_80 : i32
    %208 = arith.extui %207 : i1 to i32
    %c0_i32_81 = arith.constant 0 : i32
    %209 = arith.cmpi ne, %208, %c0_i32_81 : i32
    scf.if %209 {
      %cst_82 = arith.constant dense<0.000000e+00> : vector<2x32xf32>
      %210 = vector.multi_reduction <add>, %202, %cst_82 [1] : vector<2x8x32xf32> to vector<2x32xf32>
      %cst_83 = arith.constant 8.000000e+00 : f32
      %211 = vector.broadcast %cst_83 : f32 to vector<2x32xf32>
      %212 = arith.divf %210, %211 : vector<2x32xf32>
      %213 = tpu.concatenate %212, %149 in 1 : vector<2x32xf32>, vector<2x32xf32> -> vector<2x64xf32>
      %214 = arith.truncf %213 : vector<2x64xf32> to vector<2x64xbf16>
      %c0_84 = arith.constant 0 : index
      %c0_85 = arith.constant 0 : index
      %215 = vector.load %arg15[%c0_84, %c0_85] : memref<64x32xbf16, #tpu.memory_space<vmem>>, vector<64x32xbf16>
      %cst_86 = arith.constant dense<0.000000e+00> : vector<2x32xf32>
      %216 = tpu.matmul %214, %215, %cst_86 {dimension_numbers = #tpu.dot_dimension_numbers<[1], [0], [0], [1], [0, 0, 1, 1], [], []>} : vector<2x64xbf16>, vector<64x32xbf16>, vector<2x32xf32> -> vector<2x32xf32>
      %c0_87 = arith.constant 0 : index
      %c0_88 = arith.constant 0 : index
      %217 = vector.load %arg16[%c0_87, %c0_88] : memref<1x32xf32, #tpu.memory_space<vmem>>, vector<1x32xf32>
      %218 = vector.broadcast %217 : vector<1x32xf32> to vector<2x32xf32>
      %219 = arith.addf %216, %218 : vector<2x32xf32>
      %220 = arith.truncf %219 : vector<2x32xf32> to vector<2x32xbf16>
      %c0_89 = arith.constant 0 : index
      %c0_90 = arith.constant 0 : index
      %221 = vector.load %arg17[%c0_89, %c0_90] : memref<32x4xbf16, #tpu.memory_space<vmem>>, vector<32x4xbf16>
      %cst_91 = arith.constant dense<0.000000e+00> : vector<2x4xf32>
      %222 = tpu.matmul %220, %221, %cst_91 {dimension_numbers = #tpu.dot_dimension_numbers<[1], [0], [0], [1], [0, 0, 1, 1], [], []>} : vector<2x32xbf16>, vector<32x4xbf16>, vector<2x4xf32> -> vector<2x4xf32>
      %c0_92 = arith.constant 0 : index
      %c0_93 = arith.constant 0 : index
      %223 = vector.load %arg18[%c0_92, %c0_93] : memref<1x4xf32, #tpu.memory_space<vmem>>, vector<1x4xf32>
      %224 = vector.broadcast %223 : vector<1x4xf32> to vector<2x4xf32>
      %225 = arith.addf %222, %224 : vector<2x4xf32>
      %cst_94 = arith.constant dense<0xFF800000> : vector<2xf32>
      %226 = vector.multi_reduction <maximumf>, %225, %cst_94 [1] : vector<2x4xf32> to vector<2xf32>
      %227 = vector.shape_cast %226 : vector<2xf32> to vector<2x1xf32>
      %228 = vector.broadcast %227 : vector<2x1xf32> to vector<2x4xf32>
      %229 = arith.subf %225, %228 : vector<2x4xf32>
      %230 = math.exp %229 : vector<2x4xf32>
      %cst_95 = arith.constant dense<0.000000e+00> : vector<2xf32>
      %231 = vector.multi_reduction <add>, %230, %cst_95 [1] : vector<2x4xf32> to vector<2xf32>
      %232 = vector.shape_cast %231 : vector<2xf32> to vector<2x1xf32>
      %233 = math.log %232 : vector<2x1xf32>
      %234 = vector.broadcast %233 : vector<2x1xf32> to vector<2x4xf32>
      %235 = arith.subf %229, %234 : vector<2x4xf32>
      %c0_96 = arith.constant 0 : index
      %c0_97 = arith.constant 0 : index
      %236 = vector.load %arg19[%c0_96, %c0_97] : memref<2x4xf32, #tpu.memory_space<vmem>>, vector<2x4xf32>
      tpu.vector_store %arg19[%c0_96, %c0_97], %235 {strides = array<i32>} : memref<2x4xf32, #tpu.memory_space<vmem>>, vector<2x4xf32>,
      %c0_98 = arith.constant 0 : index
      %c0_99 = arith.constant 0 : index
      %237 = vector.load %arg20[%c0_98, %c0_99] : memref<2x32xf32, #tpu.memory_space<vmem>>, vector<2x32xf32>
      tpu.vector_store %arg20[%c0_98, %c0_99], %149 {strides = array<i32>} : memref<2x32xf32, #tpu.memory_space<vmem>>, vector<2x32xf32>,
    } else {
    }
    return
  }
  func.func @transform_0(%arg0: i32, %arg1: i32) -> (i32, i32, i32) {
    %c0_i32 = arith.constant 0 : i32
    %c0_i32_0 = arith.constant 0 : i32
    %c0_i32_1 = arith.constant 0 : i32
    return %arg0, %c0_i32, %c0_i32_0 : i32, i32, i32
  }
  func.func @transform_1(%arg0: i32, %arg1: i32) -> (i32, i32, i32) {
    %c0_i32 = arith.constant 0 : i32
    %c0_i32_0 = arith.constant 0 : i32
    %c0_i32_1 = arith.constant 0 : i32
    return %arg0, %c0_i32, %c0_i32_0 : i32, i32, i32
  }
  func.func @transform_2(%arg0: i32, %arg1: i32) -> (i32, i32) {
    %c0_i32 = arith.constant 0 : i32
    %c0_i32_0 = arith.constant 0 : i32
    return %arg0, %c0_i32 : i32, i32
  }
  func.func @transform_3(%arg0: i32, %arg1: i32) -> (i32, i32) {
    %c0_i32 = arith.constant 0 : i32
    %c0_i32_0 = arith.constant 0 : i32
    return %arg0, %c0_i32 : i32, i32
  }
  func.func @transform_4(%arg0: i32, %arg1: i32) -> (i32, i32, i32) {
    %c0_i32 = arith.constant 0 : i32
    %c0_i32_0 = arith.constant 0 : i32
    %c0_i32_1 = arith.constant 0 : i32
    return %arg0, %c0_i32, %c0_i32_0 : i32, i32, i32
  }
  func.func @transform_5(%arg0: i32, %arg1: i32) -> (i32, i32) {
    %c0_i32 = arith.constant 0 : i32
    %c0_i32_0 = arith.constant 0 : i32
    %c0_i32_1 = arith.constant 0 : i32
    return %c0_i32, %c0_i32_0 : i32, i32
  }
  func.func @transform_6(%arg0: i32, %arg1: i32) -> (i32, i32) {
    %c0_i32 = arith.constant 0 : i32
    %c0_i32_0 = arith.constant 0 : i32
    %c0_i32_1 = arith.constant 0 : i32
    return %c0_i32, %c0_i32_0 : i32, i32
  }
  func.func @transform_7(%arg0: i32, %arg1: i32) -> (i32, i32) {
    %c0_i32 = arith.constant 0 : i32
    %c0_i32_0 = arith.constant 0 : i32
    %c0_i32_1 = arith.constant 0 : i32
    return %c0_i32, %c0_i32_0 : i32, i32
  }
  func.func @transform_8(%arg0: i32, %arg1: i32) -> (i32, i32) {
    %c0_i32 = arith.constant 0 : i32
    %c0_i32_0 = arith.constant 0 : i32
    %c0_i32_1 = arith.constant 0 : i32
    return %c0_i32, %c0_i32_0 : i32, i32
  }
  func.func @transform_9(%arg0: i32, %arg1: i32) -> (i32, i32) {
    %c0_i32 = arith.constant 0 : i32
    %c0_i32_0 = arith.constant 0 : i32
    %c0_i32_1 = arith.constant 0 : i32
    return %c0_i32, %c0_i32_0 : i32, i32
  }
  func.func @transform_10(%arg0: i32, %arg1: i32) -> (i32, i32) {
    %c0_i32 = arith.constant 0 : i32
    %c0_i32_0 = arith.constant 0 : i32
    %c0_i32_1 = arith.constant 0 : i32
    return %c0_i32, %c0_i32_0 : i32, i32
  }
  func.func @transform_11(%arg0: i32, %arg1: i32) -> (i32, i32) {
    %c0_i32 = arith.constant 0 : i32
    %c0_i32_0 = arith.constant 0 : i32
    %c0_i32_1 = arith.constant 0 : i32
    return %c0_i32, %c0_i32_0 : i32, i32
  }
  func.func @transform_12(%arg0: i32, %arg1: i32) -> (i32, i32) {
    %c0_i32 = arith.constant 0 : i32
    %c0_i32_0 = arith.constant 0 : i32
    %c0_i32_1 = arith.constant 0 : i32
    return %c0_i32, %c0_i32_0 : i32, i32
  }
  func.func @transform_13(%arg0: i32, %arg1: i32) -> (i32, i32) {
    %c0_i32 = arith.constant 0 : i32
    %c0_i32_0 = arith.constant 0 : i32
    %c0_i32_1 = arith.constant 0 : i32
    return %c0_i32, %c0_i32_0 : i32, i32
  }
  func.func @transform_14(%arg0: i32, %arg1: i32) -> (i32, i32) {
    %c0_i32 = arith.constant 0 : i32
    %c0_i32_0 = arith.constant 0 : i32
    %c0_i32_1 = arith.constant 0 : i32
    return %c0_i32, %c0_i32_0 : i32, i32
  }
  func.func @transform_15(%arg0: i32, %arg1: i32) -> (i32, i32) {
    %c0_i32 = arith.constant 0 : i32
    %c0_i32_0 = arith.constant 0 : i32
    %c0_i32_1 = arith.constant 0 : i32
    return %c0_i32, %c0_i32_0 : i32, i32
  }
  func.func @transform_16(%arg0: i32, %arg1: i32) -> (i32, i32) {
    %c0_i32 = arith.constant 0 : i32
    %c0_i32_0 = arith.constant 0 : i32
    %c0_i32_1 = arith.constant 0 : i32
    return %c0_i32, %c0_i32_0 : i32, i32
  }
  func.func @transform_17(%arg0: i32, %arg1: i32) -> (i32, i32) {
    %c0_i32 = arith.constant 0 : i32
    %c0_i32_0 = arith.constant 0 : i32
    return %arg0, %c0_i32 : i32, i32
  }
  func.func @transform_18(%arg0: i32, %arg1: i32) -> (i32, i32) {
    %c0_i32 = arith.constant 0 : i32
    %c0_i32_0 = arith.constant 0 : i32
    return %arg0, %c0_i32 : i32, i32
  }
}

</mosaic_0001>

<llo_original>
// kernel: slstm_forward.1
$region0: #{slstm_forward.1}
  #allocation0 [shape = 'u32[]', space=smem, size = 0x4, offset = 0x4, fixed_abs, tag = 'smem constant byte address 0x4 - core index']
  #allocation1 [shape = 'u32[144,128]{1,0:T(1,128)}', space=vmem, size = 0x12000, scoped, tag = 'internal scratch']
  #allocation2 [shape = 'f32[2,8,32]{2,1,0:T(8,128)}', space=vmem, size = 0x2000, scoped, tag = 'scratch operand']
  #allocation3 [shape = 'f32[2,8,32]{2,1,0:T(8,128)}', space=vmem, size = 0x2000, scoped, tag = 'scratch operand']
  #allocation4 [shape = 'f32[2,32]{1,0:T(2,128)}', space=vmem, size = 0x400, scoped, tag = 'scratch operand']
  #allocation5 [shape = 'f32[2,32]{1,0:T(2,128)}', space=vmem, size = 0x400, scoped, tag = 'scratch operand']
  #allocation6 [shape = 'bf16[2,8,224]{2,1,0:T(8,128)(2,1)}', space=vmem, size = 0x2000, scoped, tag = 'scratch operand']
  %s0 = inlined_call_operand.vmem [shape: f32[2,8,32], index: 0, kind: input, shape index: {}]
  %s1 = inlined_call_operand.vmem [shape: f32[2,8,32], index: 1, kind: input, shape index: {}]
  %s2 = inlined_call_operand.vmem [shape: f32[2,32], index: 2, kind: input, shape index: {}]
  %s3 = inlined_call_operand.vmem [shape: f32[2,32], index: 3, kind: input, shape index: {}]
  %s4 = inlined_call_operand.vmem [shape: f32[2,8,32], index: 4, kind: input, shape index: {}]
  %s5 = inlined_call_operand.vmem [shape: bf16[64,96], index: 5, kind: input, shape index: {}]
  %s6 = inlined_call_operand.vmem [shape: f32[1,32], index: 6, kind: input, shape index: {}]
  %s7 = inlined_call_operand.vmem [shape: f32[1,32], index: 7, kind: input, shape index: {}]
  %s8 = inlined_call_operand.vmem [shape: f32[1,32], index: 8, kind: input, shape index: {}]
  %s9 = inlined_call_operand.vmem [shape: bf16[96,256], index: 9, kind: input, shape index: {}]
  %s10 = inlined_call_operand.vmem [shape: bf16[32,224], index: 10, kind: input, shape index: {}]
  %s11 = inlined_call_operand.vmem [shape: bf16[32,224], index: 11, kind: input, shape index: {}]
  %s12 = inlined_call_operand.vmem [shape: f32[1,224], index: 12, kind: input, shape index: {}]
  %s13 = inlined_call_operand.vmem [shape: bf16[64,32], index: 13, kind: input, shape index: {}]
  %s14 = inlined_call_operand.vmem [shape: f32[1,32], index: 14, kind: input, shape index: {}]
  %s15 = inlined_call_operand.vmem [shape: bf16[32,4], index: 15, kind: input, shape index: {}]
  %s16 = inlined_call_operand.vmem [shape: f32[1,4], index: 16, kind: input, shape index: {}]
  %s17 = inlined_call_operand.hbm [shape: f32[2,4], index: 17, kind: output, shape index: {0}]
  %s18 = inlined_call_operand.hbm [shape: f32[2,32], index: 18, kind: output, shape index: {1}]
  %19 = xla_tuple %s17, %s18
  %s20 = sld [smem:[#allocation0]]
  $region117: #{slstm_forward.1} parent=0
    _
  %s22 = ssub.s32 1, %s20
  %s23 = scalar_select 0, %s22, %s20
  $region1: #{slstm_forward.1} parent=0
    #allocation7 [shape = 'u8[1024]{0}', space=vmem, size = 0x400, scoped, tag = 'output window, operand 0, single buffered']
    #allocation8 [shape = 's32[2]{0}', space=sflag, size = 0x8, scoped, tag = 'scoped memory for slstm_forward.1']
    #allocation9 [shape = 'u8[1024]{0}', space=vmem, size = 0x400, scoped, tag = 'output window, operand 1, single buffered']
    #allocation10 [shape = 's32[1]{0}', space=sflag, size = 0x4, scoped, tag = 'scoped memory for slstm_forward.1']
    %24 = vsyncpa [#allocation8], 0
    %25 = vsyncpa [#allocation10], 0
    loop: start=0, step=1, limit=4
    $region2: #{slstm_forward.1} parent=1 // loop_pre_header
      _
    $region3: #{slstm_forward.1} parent=1 // loop_header
      %s27 = sphi 0, %s31
      %p28 = scmp.ge.s32.totalorder %s27, 4
      %s34 = sphi 0, %s46
      %s35 = sphi 0, %s42
      %s36 = sphi 0, %s34
      %s37 = sphi 0, %s35
      %s38 = sphi 0, %s36
      %s39 = sphi 0, %s37
      %s49 = sphi 0, %s51
      %s52 = sphi 0, %s49
      %s53 = sphi 0, %s52
      %s69 = sphi 0, %s53
      %s75 = sphi 0, %s77
      %s78 = sphi 0, %s75
      %s79 = sphi 0, %s78
      %s95 = sphi 0, %s79
      %s101 = sphi 0, %s103
      %s104 = sphi 0, %s101
      %s105 = sphi 0, %s104
      %s121 = sphi 0, %s105
      %s127 = sphi 0, %s129
      %s130 = sphi 0, %s127
      %s131 = sphi 0, %s130
      %s147 = sphi 0, %s131
      %s153 = sphi 0, %s155
      %s156 = sphi 0, %s153
      %s157 = sphi 0, %s156
      %s173 = sphi 0, %s157
      %s177 = sphi 0, %s177
      %s179 = sphi 0, %s177
      %s180 = sphi 0, %s179
      %s194 = sphi 0, %s180
      %s198 = sphi 0, %s198
      %s200 = sphi 0, %s198
      %s201 = sphi 0, %s200
      %s215 = sphi 0, %s201
      %s219 = sphi 0, %s219
      %s221 = sphi 0, %s219
      %s222 = sphi 0, %s221
      %s236 = sphi 0, %s222
      %s240 = sphi 0, %s240
      %s242 = sphi 0, %s240
      %s243 = sphi 0, %s242
      %s257 = sphi 0, %s243
      %s261 = sphi 0, %s261
      %s263 = sphi 0, %s261
      %s264 = sphi 0, %s263
      %s278 = sphi 0, %s264
      %s282 = sphi 0, %s282
      %s284 = sphi 0, %s282
      %s285 = sphi 0, %s284
      %s299 = sphi 0, %s285
      %s303 = sphi 0, %s303
      %s305 = sphi 0, %s303
      %s306 = sphi 0, %s305
      %s320 = sphi 0, %s306
      %s324 = sphi 0, %s324
      %s326 = sphi 0, %s324
      %s327 = sphi 0, %s326
      %s341 = sphi 0, %s327
      %s345 = sphi 0, %s345
      %s347 = sphi 0, %s345
      %s348 = sphi 0, %s347
      %s362 = sphi 0, %s348
      %s366 = sphi 0, %s366
      %s368 = sphi 0, %s366
      %s369 = sphi 0, %s368
      %s383 = sphi 0, %s369
      %s387 = sphi 0, %s387
      %s389 = sphi 0, %s387
      %s390 = sphi 0, %s389
      %s404 = sphi 0, %s390
      %s408 = sphi 0, %s408
      %s410 = sphi 0, %s408
      %s411 = sphi 0, %s410
      %s425 = sphi 0, %s411
      %s431 = sphi 0, %s433
      %s434 = sphi 0, %s431
      %s435 = sphi 0, %s434
      %s451 = sphi 0, %s435
      %s457 = sphi 0, %s459
      %s460 = sphi 0, %s457
      %s461 = sphi 0, %s460
      %s477 = sphi 0, %s461
    $region4: #{slstm_forward.1} parent=1 // loop_header_branch
      %30 = sbr.rel (%p28) target = $region8
    $region5: #{slstm_forward.1} parent=1 // loop_body
      %s32 = ssub.s32 %s27, 1
      %s33 = ssub.s32 %s27, 2
      %s40 = sadd.s32 1, %s35
      %p41 = scmp.ge.s32.totalorder %s40, 2
      %s42 = scalar_select %p41, 0, %s40
      %s43 = sadd.s32 1, %s34
      %s44 = scalar_select %p41, %s43, %s34
      %p45 = scmp.ge.s32.totalorder %s44, 1
      %s46 = scalar_select %p45, 0, %s44
      %s47 = ssub.s32 %s34, %s46
      %p48 = scmp.eq.s32.totalorder %s47, 0
      %s50 = sadd.s32 %s49, 1
      %s51 = scalar_select %p48, %s49, %s50
      %p54 = pneg %p48
      %p55 = scmp.eq.s32.totalorder %s27, 1
      %p56 = por %p54, %p55
      %p57 = scmp.ne.s32.totalorder %s49, %s52
      %p58 = scmp.eq.s32.totalorder %s27, 0
      %p59 = por %p57, %p58
      %p60 = scmp.ne.s32.totalorder %s49, %s52
      %p61 = scmp.eq.s32.totalorder %s32, 1
      %p62 = por %p60, %p61
      %p63 = scmp.ne.s32.totalorder %s52, %s53
      %p64 = scmp.eq.s32.totalorder %s32, 0
      %p65 = por %p63, %p64
      %p66 = scmp.ne.s32.totalorder %s52, %s53
      %p67 = scmp.eq.s32.totalorder %s33, 1
      %p68 = por %p66, %p67
      %p70 = scmp.ne.s32.totalorder %s53, %s69
      %p71 = scmp.eq.s32.totalorder %s33, 0
      %p72 = por %p70, %p71
      %s73 = ssub.s32 %s34, %s46
      %p74 = scmp.eq.s32.totalorder %s73, 0
      %s76 = sadd.s32 %s75, 1
      %s77 = scalar_select %p74, %s75, %s76
      %p80 = pneg %p74
      %p81 = scmp.eq.s32.totalorder %s27, 1
      %p82 = por %p80, %p81
      %p83 = scmp.ne.s32.totalorder %s75, %s78
      %p84 = scmp.eq.s32.totalorder %s27, 0
      %p85 = por %p83, %p84
      %p86 = scmp.ne.s32.totalorder %s75, %s78
      %p87 = scmp.eq.s32.totalorder %s32, 1
      %p88 = por %p86, %p87
      %p89 = scmp.ne.s32.totalorder %s78, %s79
      %p90 = scmp.eq.s32.totalorder %s32, 0
      %p91 = por %p89, %p90
      %p92 = scmp.ne.s32.totalorder %s78, %s79
      %p93 = scmp.eq.s32.totalorder %s33, 1
      %p94 = por %p92, %p93
      %p96 = scmp.ne.s32.totalorder %s79, %s95
      %p97 = scmp.eq.s32.totalorder %s33, 0
      %p98 = por %p96, %p97
      %s99 = ssub.s32 %s34, %s46
      %p100 = scmp.eq.s32.totalorder %s99, 0
      %s102 = sadd.s32 %s101, 1
      %s103 = scalar_select %p100, %s101, %s102
      %p106 = pneg %p100
      %p107 = scmp.eq.s32.totalorder %s27, 1
      %p108 = por %p106, %p107
      %p109 = scmp.ne.s32.totalorder %s101, %s104
      %p110 = scmp.eq.s32.totalorder %s27, 0
      %p111 = por %p109, %p110
      %p112 = scmp.ne.s32.totalorder %s101, %s104
      %p113 = scmp.eq.s32.totalorder %s32, 1
      %p114 = por %p112, %p113
      %p115 = scmp.ne.s32.totalorder %s104, %s105
      %p116 = scmp.eq.s32.totalorder %s32, 0
      %p117 = por %p115, %p116
      %p118 = scmp.ne.s32.totalorder %s104, %s105
      %p119 = scmp.eq.s32.totalorder %s33, 1
      %p120 = por %p118, %p119
      %p122 = scmp.ne.s32.totalorder %s105, %s121
      %p123 = scmp.eq.s32.totalorder %s33, 0
      %p124 = por %p122, %p123
      %s125 = ssub.s32 %s34, %s46
      %p126 = scmp.eq.s32.totalorder %s125, 0
      %s128 = sadd.s32 %s127, 1
      %s129 = scalar_select %p126, %s127, %s128
      %p132 = pneg %p126
      %p133 = scmp.eq.s32.totalorder %s27, 1
      %p134 = por %p132, %p133
      %p135 = scmp.ne.s32.totalorder %s127, %s130
      %p136 = scmp.eq.s32.totalorder %s27, 0
      %p137 = por %p135, %p136
      %p138 = scmp.ne.s32.totalorder %s127, %s130
      %p139 = scmp.eq.s32.totalorder %s32, 1
      %p140 = por %p138, %p139
      %p141 = scmp.ne.s32.totalorder %s130, %s131
      %p142 = scmp.eq.s32.totalorder %s32, 0
      %p143 = por %p141, %p142
      %p144 = scmp.ne.s32.totalorder %s130, %s131
      %p145 = scmp.eq.s32.totalorder %s33, 1
      %p146 = por %p144, %p145
      %p148 = scmp.ne.s32.totalorder %s131, %s147
      %p149 = scmp.eq.s32.totalorder %s33, 0
      %p150 = por %p148, %p149
      %s151 = ssub.s32 %s34, %s46
      %p152 = scmp.eq.s32.totalorder %s151, 0
      %s154 = sadd.s32 %s153, 1
      %s155 = scalar_select %p152, %s153, %s154
      %p158 = pneg %p152
      %p159 = scmp.eq.s32.totalorder %s27, 1
      %p160 = por %p158, %p159
      %p161 = scmp.ne.s32.totalorder %s153, %s156
      %p162 = scmp.eq.s32.totalorder %s27, 0
      %p163 = por %p161, %p162
      %p164 = scmp.ne.s32.totalorder %s153, %s156
      %p165 = scmp.eq.s32.totalorder %s32, 1
      %p166 = por %p164, %p165
      %p167 = scmp.ne.s32.totalorder %s156, %s157
      %p168 = scmp.eq.s32.totalorder %s32, 0
      %p169 = por %p167, %p168
      %p170 = scmp.ne.s32.totalorder %s156, %s157
      %p171 = scmp.eq.s32.totalorder %s33, 1
      %p172 = por %p170, %p171
      %p174 = scmp.ne.s32.totalorder %s157, %s173
      %p175 = scmp.eq.s32.totalorder %s33, 0
      %p176 = por %p174, %p175
      %s178 = sadd.s32 %s177, 1
      %p181 = scmp.eq.s32.totalorder %s27, 1
      %p182 = scmp.ne.s32.totalorder %s177, %s179
      %p183 = scmp.eq.s32.totalorder %s27, 0
      %p184 = por %p182, %p183
      %p185 = scmp.ne.s32.totalorder %s177, %s179
      %p186 = scmp.eq.s32.totalorder %s32, 1
      %p187 = por %p185, %p186
      %p188 = scmp.ne.s32.totalorder %s179, %s180
      %p189 = scmp.eq.s32.totalorder %s32, 0
      %p190 = por %p188, %p189
      %p191 = scmp.ne.s32.totalorder %s179, %s180
      %p192 = scmp.eq.s32.totalorder %s33, 1
      %p193 = por %p191, %p192
      %p195 = scmp.ne.s32.totalorder %s180, %s194
      %p196 = scmp.eq.s32.totalorder %s33, 0
      %p197 = por %p195, %p196
      %s199 = sadd.s32 %s198, 1
      %p202 = scmp.eq.s32.totalorder %s27, 1
      %p203 = scmp.ne.s32.totalorder %s198, %s200
      %p204 = scmp.eq.s32.totalorder %s27, 0
      %p205 = por %p203, %p204
      %p206 = scmp.ne.s32.totalorder %s198, %s200
      %p207 = scmp.eq.s32.totalorder %s32, 1
      %p208 = por %p206, %p207
      %p209 = scmp.ne.s32.totalorder %s200, %s201
      %p210 = scmp.eq.s32.totalorder %s32, 0
      %p211 = por %p209, %p210
      %p212 = scmp.ne.s32.totalorder %s200, %s201
      %p213 = scmp.eq.s32.totalorder %s33, 1
      %p214 = por %p212, %p213
      %p216 = scmp.ne.s32.totalorder %s201, %s215
      %p217 = scmp.eq.s32.totalorder %s33, 0
      %p218 = por %p216, %p217
      %s220 = sadd.s32 %s219, 1
      %p223 = scmp.eq.s32.totalorder %s27, 1
      %p224 = scmp.ne.s32.totalorder %s219, %s221
      %p225 = scmp.eq.s32.totalorder %s27, 0
      %p226 = por %p224, %p225
      %p227 = scmp.ne.s32.totalorder %s219, %s221
      %p228 = scmp.eq.s32.totalorder %s32, 1
      %p229 = por %p227, %p228
      %p230 = scmp.ne.s32.totalorder %s221, %s222
      %p231 = scmp.eq.s32.totalorder %s32, 0
      %p232 = por %p230, %p231
      %p233 = scmp.ne.s32.totalorder %s221, %s222
      %p234 = scmp.eq.s32.totalorder %s33, 1
      %p235 = por %p233, %p234
      %p237 = scmp.ne.s32.totalorder %s222, %s236
      %p238 = scmp.eq.s32.totalorder %s33, 0
      %p239 = por %p237, %p238
      %s241 = sadd.s32 %s240, 1
      %p244 = scmp.eq.s32.totalorder %s27, 1
      %p245 = scmp.ne.s32.totalorder %s240, %s242
      %p246 = scmp.eq.s32.totalorder %s27, 0
      %p247 = por %p245, %p246
      %p248 = scmp.ne.s32.totalorder %s240, %s242
      %p249 = scmp.eq.s32.totalorder %s32, 1
      %p250 = por %p248, %p249
      %p251 = scmp.ne.s32.totalorder %s242, %s243
      %p252 = scmp.eq.s32.totalorder %s32, 0
      %p253 = por %p251, %p252
      %p254 = scmp.ne.s32.totalorder %s242, %s243
      %p255 = scmp.eq.s32.totalorder %s33, 1
      %p256 = por %p254, %p255
      %p258 = scmp.ne.s32.totalorder %s243, %s257
      %p259 = scmp.eq.s32.totalorder %s33, 0
      %p260 = por %p258, %p259
      %s262 = sadd.s32 %s261, 1
      %p265 = scmp.eq.s32.totalorder %s27, 1
      %p266 = scmp.ne.s32.totalorder %s261, %s263
      %p267 = scmp.eq.s32.totalorder %s27, 0
      %p268 = por %p266, %p267
      %p269 = scmp.ne.s32.totalorder %s261, %s263
      %p270 = scmp.eq.s32.totalorder %s32, 1
      %p271 = por %p269, %p270
      %p272 = scmp.ne.s32.totalorder %s263, %s264
      %p273 = scmp.eq.s32.totalorder %s32, 0
      %p274 = por %p272, %p273
      %p275 = scmp.ne.s32.totalorder %s263, %s264
      %p276 = scmp.eq.s32.totalorder %s33, 1
      %p277 = por %p275, %p276
      %p279 = scmp.ne.s32.totalorder %s264, %s278
      %p280 = scmp.eq.s32.totalorder %s33, 0
      %p281 = por %p279, %p280
      %s283 = sadd.s32 %s282, 1
      %p286 = scmp.eq.s32.totalorder %s27, 1
      %p287 = scmp.ne.s32.totalorder %s282, %s284
      %p288 = scmp.eq.s32.totalorder %s27, 0
      %p289 = por %p287, %p288
      %p290 = scmp.ne.s32.totalorder %s282, %s284
      %p291 = scmp.eq.s32.totalorder %s32, 1
      %p292 = por %p290, %p291
      %p293 = scmp.ne.s32.totalorder %s284, %s285
      %p294 = scmp.eq.s32.totalorder %s32, 0
      %p295 = por %p293, %p294
      %p296 = scmp.ne.s32.totalorder %s284, %s285
      %p297 = scmp.eq.s32.totalorder %s33, 1
      %p298 = por %p296, %p297
      %p300 = scmp.ne.s32.totalorder %s285, %s299
      %p301 = scmp.eq.s32.totalorder %s33, 0
      %p302 = por %p300, %p301
      %s304 = sadd.s32 %s303, 1
      %p307 = scmp.eq.s32.totalorder %s27, 1
      %p308 = scmp.ne.s32.totalorder %s303, %s305
      %p309 = scmp.eq.s32.totalorder %s27, 0
      %p310 = por %p308, %p309
      %p311 = scmp.ne.s32.totalorder %s303, %s305
      %p312 = scmp.eq.s32.totalorder %s32, 1
      %p313 = por %p311, %p312
      %p314 = scmp.ne.s32.totalorder %s305, %s306
      %p315 = scmp.eq.s32.totalorder %s32, 0
      %p316 = por %p314, %p315
      %p317 = scmp.ne.s32.totalorder %s305, %s306
      %p318 = scmp.eq.s32.totalorder %s33, 1
      %p319 = por %p317, %p318
      %p321 = scmp.ne.s32.totalorder %s306, %s320
      %p322 = scmp.eq.s32.totalorder %s33, 0
      %p323 = por %p321, %p322
      %s325 = sadd.s32 %s324, 1
      %p328 = scmp.eq.s32.totalorder %s27, 1
      %p329 = scmp.ne.s32.totalorder %s324, %s326
      %p330 = scmp.eq.s32.totalorder %s27, 0
      %p331 = por %p329, %p330
      %p332 = scmp.ne.s32.totalorder %s324, %s326
      %p333 = scmp.eq.s32.totalorder %s32, 1
      %p334 = por %p332, %p333
      %p335 = scmp.ne.s32.totalorder %s326, %s327
      %p336 = scmp.eq.s32.totalorder %s32, 0
      %p337 = por %p335, %p336
      %p338 = scmp.ne.s32.totalorder %s326, %s327
      %p339 = scmp.eq.s32.totalorder %s33, 1
      %p340 = por %p338, %p339
      %p342 = scmp.ne.s32.totalorder %s327, %s341
      %p343 = scmp.eq.s32.totalorder %s33, 0
      %p344 = por %p342, %p343
      %s346 = sadd.s32 %s345, 1
      %p349 = scmp.eq.s32.totalorder %s27, 1
      %p350 = scmp.ne.s32.totalorder %s345, %s347
      %p351 = scmp.eq.s32.totalorder %s27, 0
      %p352 = por %p350, %p351
      %p353 = scmp.ne.s32.totalorder %s345, %s347
      %p354 = scmp.eq.s32.totalorder %s32, 1
      %p355 = por %p353, %p354
      %p356 = scmp.ne.s32.totalorder %s347, %s348
      %p357 = scmp.eq.s32.totalorder %s32, 0
      %p358 = por %p356, %p357
      %p359 = scmp.ne.s32.totalorder %s347, %s348
      %p360 = scmp.eq.s32.totalorder %s33, 1
      %p361 = por %p359, %p360
      %p363 = scmp.ne.s32.totalorder %s348, %s362
      %p364 = scmp.eq.s32.totalorder %s33, 0
      %p365 = por %p363, %p364
      %s367 = sadd.s32 %s366, 1
      %p370 = scmp.eq.s32.totalorder %s27, 1
      %p371 = scmp.ne.s32.totalorder %s366, %s368
      %p372 = scmp.eq.s32.totalorder %s27, 0
      %p373 = por %p371, %p372
      %p374 = scmp.ne.s32.totalorder %s366, %s368
      %p375 = scmp.eq.s32.totalorder %s32, 1
      %p376 = por %p374, %p375
      %p377 = scmp.ne.s32.totalorder %s368, %s369
      %p378 = scmp.eq.s32.totalorder %s32, 0
      %p379 = por %p377, %p378
      %p380 = scmp.ne.s32.totalorder %s368, %s369
      %p381 = scmp.eq.s32.totalorder %s33, 1
      %p382 = por %p380, %p381
      %p384 = scmp.ne.s32.totalorder %s369, %s383
      %p385 = scmp.eq.s32.totalorder %s33, 0
      %p386 = por %p384, %p385
      %s388 = sadd.s32 %s387, 1
      %p391 = scmp.eq.s32.totalorder %s27, 1
      %p392 = scmp.ne.s32.totalorder %s387, %s389
      %p393 = scmp.eq.s32.totalorder %s27, 0
      %p394 = por %p392, %p393
      %p395 = scmp.ne.s32.totalorder %s387, %s389
      %p396 = scmp.eq.s32.totalorder %s32, 1
      %p397 = por %p395, %p396
      %p398 = scmp.ne.s32.totalorder %s389, %s390
      %p399 = scmp.eq.s32.totalorder %s32, 0
      %p400 = por %p398, %p399
      %p401 = scmp.ne.s32.totalorder %s389, %s390
      %p402 = scmp.eq.s32.totalorder %s33, 1
      %p403 = por %p401, %p402
      %p405 = scmp.ne.s32.totalorder %s390, %s404
      %p406 = scmp.eq.s32.totalorder %s33, 0
      %p407 = por %p405, %p406
      %s409 = sadd.s32 %s408, 1
      %p412 = scmp.eq.s32.totalorder %s27, 1
      %p413 = scmp.ne.s32.totalorder %s408, %s410
      %p414 = scmp.eq.s32.totalorder %s27, 0
      %p415 = por %p413, %p414
      %p416 = scmp.ne.s32.totalorder %s408, %s410
      %p417 = scmp.eq.s32.totalorder %s32, 1
      %p418 = por %p416, %p417
      %p419 = scmp.ne.s32.totalorder %s410, %s411
      %p420 = scmp.eq.s32.totalorder %s32, 0
      %p421 = por %p419, %p420
      %p422 = scmp.ne.s32.totalorder %s410, %s411
      %p423 = scmp.eq.s32.totalorder %s33, 1
      %p424 = por %p422, %p423
      %p426 = scmp.ne.s32.totalorder %s411, %s425
      %p427 = scmp.eq.s32.totalorder %s33, 0
      %p428 = por %p426, %p427
      %s429 = ssub.s32 %s34, %s46
      %p430 = scmp.eq.s32.totalorder %s429, 0
      %s432 = sadd.s32 %s431, 1
      %s433 = scalar_select %p430, %s431, %s432
      %p436 = pneg %p430
      %p437 = scmp.eq.s32.totalorder %s27, 1
      %p438 = por %p436, %p437
      %p439 = scmp.ne.s32.totalorder %s431, %s434
      %p440 = scmp.eq.s32.totalorder %s27, 0
      %p441 = por %p439, %p440
      %p442 = scmp.ne.s32.totalorder %s431, %s434
      %p443 = scmp.eq.s32.totalorder %s32, 1
      %p444 = por %p442, %p443
      %p445 = scmp.ne.s32.totalorder %s434, %s435
      %p446 = scmp.eq.s32.totalorder %s32, 0
      %p447 = por %p445, %p446
      %p448 = scmp.ne.s32.totalorder %s434, %s435
      %p449 = scmp.eq.s32.totalorder %s33, 1
      %p450 = por %p448, %p449
      %p452 = scmp.ne.s32.totalorder %s435, %s451
      %p453 = scmp.eq.s32.totalorder %s33, 0
      %p454 = por %p452, %p453
      %s455 = ssub.s32 %s34, %s46
      %p456 = scmp.eq.s32.totalorder %s455, 0
      %s458 = sadd.s32 %s457, 1
      %s459 = scalar_select %p456, %s457, %s458
      %p462 = pneg %p456
      %p463 = scmp.eq.s32.totalorder %s27, 1
      %p464 = por %p462, %p463
      %p465 = scmp.ne.s32.totalorder %s457, %s460
      %p466 = scmp.eq.s32.totalorder %s27, 0
      %p467 = por %p465, %p466
      %p468 = scmp.ne.s32.totalorder %s457, %s460
      %p469 = scmp.eq.s32.totalorder %s32, 1
      %p470 = por %p468, %p469
      %p471 = scmp.ne.s32.totalorder %s460, %s461
      %p472 = scmp.eq.s32.totalorder %s32, 0
      %p473 = por %p471, %p472
      %p474 = scmp.ne.s32.totalorder %s460, %s461
      %p475 = scmp.eq.s32.totalorder %s33, 1
      %p476 = por %p474, %p475
      %p478 = scmp.ne.s32.totalorder %s461, %s477
      %p479 = scmp.eq.s32.totalorder %s33, 0
      %p480 = por %p478, %p479
      %p481 = scmp.le.s32.totalorder 1, %s27
      %p482 = scmp.lt.s32.totalorder %s27, 3
      %p483 = pnand %p481, %p482
      %p484 = pneg %p483
      // Predicated region
      $region9: #{slstm_forward.1} parent=5 // pred_check
        _
      $region10: #{slstm_forward.1} parent=5 // pred_check_branch
        %486 = sbr.rel (%p483) target = $region12
      $region11: #{slstm_forward.1} parent=5 // pred_region
        %s487 = ssub.s32 %s27, 1
        // Predicated region
        $region13: #{slstm_forward.1} parent=11 // pred_check
          %p488 = pneg %p65
        $region14: #{slstm_forward.1} parent=11 // pred_check_branch
          %490 = sbr.rel (%p488) target = $region16
        $region15: #{slstm_forward.1} parent=11 // pred_region
          %s491 = smul.u32 2, %s36
          %p492 = scmp.lt.s32.totalorder %s491, 1
          %s493 = scalar_select %p492, %s491, 1
          %s494 = smul.addr %s493, 8
          %s495 = scalar_lea.vmem %s0, %s494
          %s496 = smul.u32 2, %s36
        $region16: #{slstm_forward.1} parent=11 // pred_fallthru
          _
        // Predicated region
        $region17: #{slstm_forward.1} parent=11 // pred_check
          %p497 = pneg %p91
        $region18: #{slstm_forward.1} parent=11 // pred_check_branch
          %499 = sbr.rel (%p497) target = $region20
        $region19: #{slstm_forward.1} parent=11 // pred_region
          %s500 = smul.u32 2, %s36
          %p501 = scmp.lt.s32.totalorder %s500, 1
          %s502 = scalar_select %p501, %s500, 1
          %s503 = smul.addr %s502, 8
          %s504 = scalar_lea.vmem %s1, %s503
          %s505 = smul.u32 2, %s36
        $region20: #{slstm_forward.1} parent=11 // pred_fallthru
          _
        // Predicated region
        $region21: #{slstm_forward.1} parent=11 // pred_check
          %p506 = pneg %p117
        $region22: #{slstm_forward.1} parent=11 // pred_check_branch
          %508 = sbr.rel (%p506) target = $region24
        $region23: #{slstm_forward.1} parent=11 // pred_region
          %p509 = scmp.lt.s32.totalorder %s36, 0
          %s510 = scalar_select %p509, %s36, 0
          %s511 = smul.addr %s510, 2
          %s512 = scalar_lea.vmem %s2, %s511
        $region24: #{slstm_forward.1} parent=11 // pred_fallthru
          _
        // Predicated region
        $region25: #{slstm_forward.1} parent=11 // pred_check
          %p513 = pneg %p143
        $region26: #{slstm_forward.1} parent=11 // pred_check_branch
          %515 = sbr.rel (%p513) target = $region28
        $region27: #{slstm_forward.1} parent=11 // pred_region
          %p516 = scmp.lt.s32.totalorder %s36, 0
          %s517 = scalar_select %p516, %s36, 0
          %s518 = smul.addr %s517, 2
          %s519 = scalar_lea.vmem %s3, %s518
        $region28: #{slstm_forward.1} parent=11 // pred_fallthru
          _
        // Predicated region
        $region29: #{slstm_forward.1} parent=11 // pred_check
          %p520 = pneg %p169
        $region30: #{slstm_forward.1} parent=11 // pred_check_branch
          %522 = sbr.rel (%p520) target = $region32
        $region31: #{slstm_forward.1} parent=11 // pred_region
          %s523 = smul.u32 2, %s36
          %p524 = scmp.lt.s32.totalorder %s523, 1
          %s525 = scalar_select %p524, %s523, 1
          %s526 = smul.addr %s525, 8
          %s527 = scalar_lea.vmem %s4, %s526
          %s528 = smul.u32 2, %s36
        $region32: #{slstm_forward.1} parent=11 // pred_fallthru
          _
        // Predicated region
        $region33: #{slstm_forward.1} parent=11 // pred_check
          %p529 = pneg %p190
        $region34: #{slstm_forward.1} parent=11 // pred_check_branch
          %531 = sbr.rel (%p529) target = $region36
        $region35: #{slstm_forward.1} parent=11 // pred_region
          _
        $region36: #{slstm_forward.1} parent=11 // pred_fallthru
          _
        // Predicated region
        $region37: #{slstm_forward.1} parent=11 // pred_check
          %p532 = pneg %p211
        $region38: #{slstm_forward.1} parent=11 // pred_check_branch
          %534 = sbr.rel (%p532) target = $region40
        $region39: #{slstm_forward.1} parent=11 // pred_region
          _
        $region40: #{slstm_forward.1} parent=11 // pred_fallthru
          _
        // Predicated region
        $region41: #{slstm_forward.1} parent=11 // pred_check
          %p535 = pneg %p232
        $region42: #{slstm_forward.1} parent=11 // pred_check_branch
          %537 = sbr.rel (%p535) target = $region44
        $region43: #{slstm_forward.1} parent=11 // pred_region
          _
        $region44: #{slstm_forward.1} parent=11 // pred_fallthru
          _
        // Predicated region
        $region45: #{slstm_forward.1} parent=11 // pred_check
          %p538 = pneg %p253
        $region46: #{slstm_forward.1} parent=11 // pred_check_branch
          %540 = sbr.rel (%p538) target = $region48
        $region47: #{slstm_forward.1} parent=11 // pred_region
          _
        $region48: #{slstm_forward.1} parent=11 // pred_fallthru
          _
        // Predicated region
        $region49: #{slstm_forward.1} parent=11 // pred_check
          %p541 = pneg %p274
        $region50: #{slstm_forward.1} parent=11 // pred_check_branch
          %543 = sbr.rel (%p541) target = $region52
        $region51: #{slstm_forward.1} parent=11 // pred_region
          _
        $region52: #{slstm_forward.1} parent=11 // pred_fallthru
          _
        // Predicated region
        $region53: #{slstm_forward.1} parent=11 // pred_check
          %p544 = pneg %p295
        $region54: #{slstm_forward.1} parent=11 // pred_check_branch
          %546 = sbr.rel (%p544) target = $region56
        $region55: #{slstm_forward.1} parent=11 // pred_region
          _
        $region56: #{slstm_forward.1} parent=11 // pred_fallthru
          _
        // Predicated region
        $region57: #{slstm_forward.1} parent=11 // pred_check
          %p547 = pneg %p316
        $region58: #{slstm_forward.1} parent=11 // pred_check_branch
          %549 = sbr.rel (%p547) target = $region60
        $region59: #{slstm_forward.1} parent=11 // pred_region
          _
        $region60: #{slstm_forward.1} parent=11 // pred_fallthru
          _
        // Predicated region
        $region61: #{slstm_forward.1} parent=11 // pred_check
          %p550 = pneg %p337
        $region62: #{slstm_forward.1} parent=11 // pred_check_branch
          %552 = sbr.rel (%p550) target = $region64
        $region63: #{slstm_forward.1} parent=11 // pred_region
          _
        $region64: #{slstm_forward.1} parent=11 // pred_fallthru
          _
        // Predicated region
        $region65: #{slstm_forward.1} parent=11 // pred_check
          %p553 = pneg %p358
        $region66: #{slstm_forward.1} parent=11 // pred_check_branch
          %555 = sbr.rel (%p553) target = $region68
        $region67: #{slstm_forward.1} parent=11 // pred_region
          _
        $region68: #{slstm_forward.1} parent=11 // pred_fallthru
          _
        // Predicated region
        $region69: #{slstm_forward.1} parent=11 // pred_check
          %p556 = pneg %p379
        $region70: #{slstm_forward.1} parent=11 // pred_check_branch
          %558 = sbr.rel (%p556) target = $region72
        $region71: #{slstm_forward.1} parent=11 // pred_region
          _
        $region72: #{slstm_forward.1} parent=11 // pred_fallthru
          _
        // Predicated region
        $region73: #{slstm_forward.1} parent=11 // pred_check
          %p559 = pneg %p400
        $region74: #{slstm_forward.1} parent=11 // pred_check_branch
          %561 = sbr.rel (%p559) target = $region76
        $region75: #{slstm_forward.1} parent=11 // pred_region
          _
        $region76: #{slstm_forward.1} parent=11 // pred_fallthru
          _
        // Predicated region
        $region77: #{slstm_forward.1} parent=11 // pred_check
          %p562 = pneg %p421
        $region78: #{slstm_forward.1} parent=11 // pred_check_branch
          %564 = sbr.rel (%p562) target = $region80
        $region79: #{slstm_forward.1} parent=11 // pred_region
          _
        $region80: #{slstm_forward.1} parent=11 // pred_fallthru
          _
      $region12: #{slstm_forward.1} parent=5 // pred_fallthru
        _
      %p565 = scmp.lt.s32.totalorder %s27, 2
      // Predicated region
      $region81: #{slstm_forward.1} parent=5 // pred_check
        %p566 = pneg %p565
      $region82: #{slstm_forward.1} parent=5 // pred_check_branch
        %568 = sbr.rel (%p566) target = $region84
      $region83: #{slstm_forward.1} parent=5 // pred_region
        _
      $region84: #{slstm_forward.1} parent=5 // pred_fallthru
        _
      %p569 = scmp.le.s32.totalorder 1, %s27
      %p570 = scmp.lt.s32.totalorder %s27, 3
      %p571 = pnand %p569, %p570
      %p572 = pneg %p571
      // Predicated region
      $region85: #{slstm_forward.1} parent=5 // pred_check
        _
      $region86: #{slstm_forward.1} parent=5 // pred_check_branch
        %574 = sbr.rel (%p571) target = $region88
      $region87: #{slstm_forward.1} parent=5 // pred_region
        %s575 = ssub.s32 %s27, 1
        %s576 = smul.u32 2, %s36
        %p577 = scmp.lt.s32.totalorder %s576, 1
        %s578 = scalar_select %p577, %s576, 1
        %s579 = smul.addr %s578, 8
        %s580 = scalar_lea.vmem %s0, %s579
        %p581 = pneg %p65
        %p582 = pneg %p62
        %s583 = smul.u32 2, %s36
        %p584 = scmp.lt.s32.totalorder %s583, 1
        %s585 = scalar_select %p584, %s583, 1
        %s586 = smul.addr %s585, 8
        %s587 = scalar_lea.vmem %s1, %s586
        %p588 = pneg %p91
        %p589 = pneg %p88
        %p590 = scmp.lt.s32.totalorder %s36, 0
        %s591 = scalar_select %p590, %s36, 0
        %s592 = smul.addr %s591, 2
        %s593 = scalar_lea.vmem %s2, %s592
        %p594 = pneg %p117
        %p595 = pneg %p114
        %p596 = scmp.lt.s32.totalorder %s36, 0
        %s597 = scalar_select %p596, %s36, 0
        %s598 = smul.addr %s597, 2
        %s599 = scalar_lea.vmem %s3, %s598
        %p600 = pneg %p143
        %p601 = pneg %p140
        %s602 = smul.u32 2, %s36
        %p603 = scmp.lt.s32.totalorder %s602, 1
        %s604 = scalar_select %p603, %s602, 1
        %s605 = smul.addr %s604, 8
        %s606 = scalar_lea.vmem %s4, %s605
        %p607 = pneg %p169
        %p608 = pneg %p166
        %p609 = pneg %p190
        %p610 = pneg %p187
        %p611 = pneg %p211
        %p612 = pneg %p208
        %p613 = pneg %p232
        %p614 = pneg %p229
        %p615 = pneg %p253
        %p616 = pneg %p250
        %p617 = pneg %p274
        %p618 = pneg %p271
        %p619 = pneg %p295
        %p620 = pneg %p292
        %p621 = pneg %p316
        %p622 = pneg %p313
        %p623 = pneg %p337
        %p624 = pneg %p334
        %p625 = pneg %p358
        %p626 = pneg %p355
        %p627 = pneg %p379
        %p628 = pneg %p376
        %p629 = pneg %p400
        %p630 = pneg %p397
        %p631 = pneg %p421
        %p632 = pneg %p418
        %p633 = pneg %p447
        %p634 = pneg %p444
        %p635 = pneg %p473
        %p636 = pneg %p470
        %s637 = smul.u32 2, %s36
        %p638 = scmp.lt.s32.totalorder %s637, 1
        %s639 = scalar_select %p638, %s637, 1
        %s640 = smul.addr %s639, 8
        %s641 = scalar_lea.vmem %s0, %s640
        %s642 = smul.u32 2, %s36
        %s643 = smul.u32 2, %s36
        %p644 = scmp.lt.s32.totalorder %s643, 1
        %s645 = scalar_select %p644, %s643, 1
        %s646 = smul.addr %s645, 8
        %s647 = scalar_lea.vmem %s1, %s646
        %s648 = smul.u32 2, %s36
        %p649 = scmp.lt.s32.totalorder %s36, 0
        %s650 = scalar_select %p649, %s36, 0
        %s651 = smul.addr %s650, 2
        %s652 = scalar_lea.vmem %s2, %s651
        %p653 = scmp.lt.s32.totalorder %s36, 0
        %s654 = scalar_select %p653, %s36, 0
        %s655 = smul.addr %s654, 2
        %s656 = scalar_lea.vmem %s3, %s655
        %s657 = smul.u32 2, %s36
        %p658 = scmp.lt.s32.totalorder %s657, 1
        %s659 = scalar_select %p658, %s657, 1
        %s660 = smul.addr %s659, 8
        %s661 = scalar_lea.vmem %s4, %s660
        %s662 = smul.u32 2, %s36
        %p664 = scmp.eq.s32.totalorder %s37, 0
        // Predicated region
        $region89: #{slstm_forward.1} parent=87 // pred_check
          %p665 = pneg %p664
        $region90: #{slstm_forward.1} parent=87 // pred_check_branch
          %667 = sbr.rel (%p665) target = $region92
        $region91: #{slstm_forward.1} parent=87 // pred_region
          %v668 = vld [vmem:[%s641] sm:$0xff]
          %v669 = vld [vmem:[%s641 + $0x8] sm:$0xff]
          %vm670 = vcmask 261120
          %671 = vst.msk [vmem:[#allocation2] sm:$0xff] %vm670, %v668
          %672 = vst.msk [vmem:[#allocation2 + $0x8] sm:$0xff] %vm670, %v669
          %v673 = vld [vmem:[%s647] sm:$0xff]
          %v674 = vld [vmem:[%s647 + $0x8] sm:$0xff]
          %675 = vst.msk [vmem:[#allocation3] sm:$0xff] %vm670, %v673
          %676 = vst.msk [vmem:[#allocation3 + $0x8] sm:$0xff] %vm670, %v674
          %v677 = vld [vmem:[%s652] sm:$0x3]
          %vm678 = vcmask 254976
          %679 = vst.msk [vmem:[#allocation4] sm:$0x3] %vm678, %v677
          %v680 = vld [vmem:[%s656] sm:$0x3]
          %681 = vst.msk [vmem:[#allocation5] sm:$0x3] %vm678, %v680
          %v682 = vld [vmem:[%s661] sm:$0xff]
          %v683 = vld [vmem:[%s661 + $0x8] sm:$0xff]
          %v684 = vpack.c.bf16 %v683, %v682
          %v685 = vld [vmem:[%s10] sm:$0xff]
          %v686 = vld [vmem:[%s10 + $0x8] sm:$0xff]
          %v687 = vld [vmem:[%s10 + $0x10] sm:$0xff]
          %v688 = vld [vmem:[%s10 + $0x18] sm:$0xff]
          %v693 = vunpack.c.l.b16 %v685
          %v694 = vunpack.c.h.b16 %v685
          %v695 = vunpack.c.l.b16 %v686
          %v696 = vunpack.c.h.b16 %v686
          %v697 = vunpack.c.l.b16 %v687
          %v698 = vunpack.c.h.b16 %v687
          %v699 = vunpack.c.l.b16 %v688
          %v700 = vunpack.c.h.b16 %v688
          %v701 = vpack.c.b16 %v695, %v693
          %v702 = vpack.c.b16 %v696, %v694
          %v703 = vpack.c.b16 %v699, %v697
          %v704 = vpack.c.b16 %v700, %v698
          %v710 = vsel %vm670, %v684, 0
          %712 = vmatprep.subr.bf16.mxu0 %v702
          %713 = vmatpush1.bf16.msra.mxu0 %v701
          %714 = vmatprep.subr.bf16.mxu0 %v704
          %715 = vmatpush1.bf16.msra.mxu0 %v703
          %716 = vmatprep.subr.bf16.mxu0 0
          %717 = vmatpush1.bf16.msra.mxu0 0
          %718 = vmatprep.subr.bf16.mxu0 0
          %719 = vmatpush1.bf16.msra.mxu0 0
          %720 = vmatprep.subr.bf16.mxu0 0
          %721 = vmatpush1.bf16.msra.mxu0 0
          %722 = vmatprep.subr.bf16.mxu0 0
          %723 = vmatpush1.bf16.msra.mxu0 0
          %724 = vmatprep.subr.bf16.mxu0 0
          %725 = vmatpush1.bf16.msra.mxu0 0
          %726 = vmatprep.subr.bf16.mxu0 0
          %727 = vmatpush1.bf16.msra.mxu0 0
          %728 = vmatprep.subr.bf16.mxu0 0
          %729 = vmatpush1.bf16.msra.mxu0 0
          %730 = vmatprep.subr.bf16.mxu0 0
          %731 = vmatpush1.bf16.msra.mxu0 0
          %732 = vmatprep.subr.bf16.mxu0 0
          %733 = vmatpush1.bf16.msra.mxu0 0
          %734 = vmatprep.subr.bf16.mxu0 0
          %735 = vmatpush1.bf16.msra.mxu0 0
          %736 = vmatprep.subr.bf16.mxu0 0
          %737 = vmatpush1.bf16.msra.mxu0 0
          %738 = vmatprep.subr.bf16.mxu0 0
          %739 = vmatpush1.bf16.msra.mxu0 0
          %740 = vmatprep.subr.bf16.mxu0 0
          %741 = vmatpush1.bf16.msra.mxu0 0
          %742 = vmatprep.subr.bf16.mxu0 0
          %743 = vmatpush1.bf16.msra.mxu0 0
          %744 = vmatprep.mubr.bf16.mxu0 0
          %745 = vmatmul.mubr.bf16.gmra.mrb[0].mxu0 %v710
          %v746 = vpop.f32.mrb[0].mxu0
          %v747 = vadd.f32 0.0, %v746
          %v748 = vpop.f32.mrb[0].mxu0
          %v749 = vadd.f32 0.0, %v748
          %v750 = vpop.f32.mrb[0].mxu0
          %v751 = vadd.f32 0.0, %v750
          %v752 = vpop.f32.mrb[0].mxu0
          %v753 = vadd.f32 0.0, %v752
          %754 = vdwg.mxu0
          %v755 = vpack.c.bf16 %v747, %v747
          %v756 = vpack.c.bf16 %v749, %v749
          %v757 = vpack.c.bf16 %v751, %v751
          %v758 = vpack.c.bf16 %v753, %v753
          %v763 = vunpack.c.l.b16 %v755
          %v764 = vunpack.c.l.b16 %v756
          %v765 = vunpack.c.l.b16 %v757
          %v766 = vunpack.c.l.b16 %v758
          %v767 = vpack.c.b16 %v764, %v763
          %v768 = vpack.c.b16 %v766, %v765
          %vm771 = vcmask 1043456
          %vm772 = vcmask 785412
          %vm773 = vmor %vm772, %vm771
          %774 = vst.msk [vmem:[#allocation6] sm:$0xff] %vm773, %v767
          %775 = vst.msk [vmem:[#allocation6 + $0x8] sm:$0xff] %vm773, %v768
        $region92: #{slstm_forward.1} parent=87 // pred_fallthru
          _
        %v776 = vld [vmem:[#allocation2] sm:$0xff]
        %v777 = vld [vmem:[#allocation2 + $0x8] sm:$0xff]
        %v778 = vld [vmem:[#allocation3] sm:$0xff]
        %v779 = vld [vmem:[#allocation3 + $0x8] sm:$0xff]
        %v780 = vld [vmem:[#allocation4] sm:$0x3]
        %v781 = vld [vmem:[#allocation5] sm:$0x3]
        %v782 = vlaneseq
        %v783 = vshrl.u32 %v782, 7
        %v784 = vrot.slane %v776, 7
        %v785 = vrot.slane %v777, 7
        %vm786 = vcmp.ge.s32.totalorder %v783, 1
        %v787 = vsel %vm786, 1, 0
        %vm788 = vcmp.eq.s32.totalorder %v787, 1
        %v789 = vsel %vm788, %v784, 0.0
        %v790 = vsel %vm788, %v785, 0.0
        %v791 = vadd.f32 %v789, 0.0
        %v792 = vadd.f32 %v790, 0.0
        %v793 = vrot.slane %v776, 1
        %v794 = vrot.slane %v777, 1
        %vm795 = vcmp.lt.s32.totalorder %v783, 7
        %v796 = vsel %vm795, 1, 0
        %vm797 = vcmp.eq.s32.totalorder %v796, 1
        %v798 = vsel %vm797, %v793, 0.0
        %v799 = vsel %vm797, %v794, 0.0
        %v800 = vadd.f32 %v798, 0.0
        %v801 = vadd.f32 %v799, 0.0
        %v802 = vrot.slane %v776, 6
        %v803 = vrot.slane %v777, 6
        %vm804 = vcmp.ge.s32.totalorder %v783, 2
        %v805 = vsel %vm804, 1, 0
        %vm806 = vcmp.eq.s32.totalorder %v805, 1
        %v807 = vsel %vm806, %v802, 0.0
        %v808 = vsel %vm806, %v803, 0.0
        %v809 = vadd.f32 %v791, %v807
        %v810 = vadd.f32 %v792, %v808
        %v811 = vrot.slane %v776, 2
        %v812 = vrot.slane %v777, 2
        %vm813 = vcmp.lt.s32.totalorder %v783, 6
        %v814 = vsel %vm813, 1, 0
        %vm815 = vcmp.eq.s32.totalorder %v814, 1
        %v816 = vsel %vm815, %v811, 0.0
        %v817 = vsel %vm815, %v812, 0.0
        %v818 = vadd.f32 %v800, %v816
        %v819 = vadd.f32 %v801, %v817
        %v820 = vrot.slane %v778, 7
        %v821 = vrot.slane %v779, 7
        %v822 = vsel %vm788, %v820, 0.0
        %v823 = vsel %vm788, %v821, 0.0
        %v824 = vadd.f32 %v822, 0.0
        %v825 = vadd.f32 %v823, 0.0
        %v826 = vrot.slane %v778, 1
        %v827 = vrot.slane %v779, 1
        %v828 = vsel %vm797, %v826, 0.0
        %v829 = vsel %vm797, %v827, 0.0
        %v830 = vadd.f32 %v828, 0.0
        %v831 = vadd.f32 %v829, 0.0
        %v832 = vrot.slane %v778, 6
        %v833 = vrot.slane %v779, 6
        %v834 = vsel %vm806, %v832, 0.0
        %v835 = vsel %vm806, %v833, 0.0
        %v836 = vadd.f32 %v824, %v834
        %v837 = vadd.f32 %v825, %v835
        %v838 = vrot.slane %v778, 2
        %v839 = vrot.slane %v779, 2
        %v840 = vsel %vm815, %v838, 0.0
        %v841 = vsel %vm815, %v839, 0.0
        %v842 = vadd.f32 %v830, %v840
        %v843 = vadd.f32 %v831, %v841
        %846 = vrot.lane.b32.xlu0 %v818, 32
        %v847 = vpop.permute.xlu0 %846
        %848 = vrot.lane.b32.xlu0 %v819, 32
        %v849 = vpop.permute.xlu0 %848
        %854 = vrot.lane.b32.xlu0 %v776, 64
        %v855 = vpop.permute.xlu0 %854
        %856 = vrot.lane.b32.xlu0 %v777, 64
        %v857 = vpop.permute.xlu0 %856
        %vm860 = vcmask 261120
        %v861 = vsel %vm860, %v809, %v847
        %v862 = vsel %vm860, %v810, %v849
        %vm863 = vcmask 523264
        %v864 = vsel %vm863, %v861, %v855
        %v865 = vsel %vm863, %v862, %v857
        %v866 = vpack.c.bf16 %v865, %v864
        %v867 = vld [vmem:[%s9] sm:$0xff]
        %v868 = vld [vmem:[%s9 + $0x8] sm:$0xff]
        %v869 = vld [vmem:[%s9 + $0x10] sm:$0xff]
        %v870 = vld [vmem:[%s9 + $0x18] sm:$0xff]
        %v871 = vld [vmem:[%s9 + $0x20] sm:$0xff]
        %v872 = vld [vmem:[%s9 + $0x28] sm:$0xff]
        %v873 = vld [vmem:[%s9 + $0x30] sm:$0xff]
        %v874 = vld [vmem:[%s9 + $0x38] sm:$0xff]
        %v875 = vld [vmem:[%s9 + $0x40] sm:$0xff]
        %v876 = vld [vmem:[%s9 + $0x48] sm:$0xff]
        %v877 = vld [vmem:[%s9 + $0x50] sm:$0xff]
        %v878 = vld [vmem:[%s9 + $0x58] sm:$0xff]
        %v891 = vunpack.c.l.b16 %v867
        %v892 = vunpack.c.h.b16 %v867
        %v893 = vunpack.c.l.b16 %v868
        %v894 = vunpack.c.h.b16 %v868
        %v895 = vunpack.c.l.b16 %v869
        %v896 = vunpack.c.h.b16 %v869
        %v897 = vunpack.c.l.b16 %v870
        %v898 = vunpack.c.h.b16 %v870
        %v899 = vunpack.c.l.b16 %v871
        %v900 = vunpack.c.h.b16 %v871
        %v901 = vunpack.c.l.b16 %v872
        %v902 = vunpack.c.h.b16 %v872
        %v903 = vunpack.c.l.b16 %v873
        %v904 = vunpack.c.h.b16 %v873
        %v905 = vunpack.c.l.b16 %v874
        %v906 = vunpack.c.h.b16 %v874
        %v907 = vunpack.c.l.b16 %v875
        %v908 = vunpack.c.h.b16 %v875
        %v909 = vunpack.c.l.b16 %v876
        %v910 = vunpack.c.h.b16 %v876
        %v911 = vunpack.c.l.b16 %v877
        %v912 = vunpack.c.h.b16 %v877
        %v913 = vunpack.c.l.b16 %v878
        %v914 = vunpack.c.h.b16 %v878
        %v915 = vpack.c.b16 %v893, %v891
        %v916 = vpack.c.b16 %v894, %v892
        %v917 = vpack.c.b16 %v897, %v895
        %v918 = vpack.c.b16 %v898, %v896
        %v919 = vpack.c.b16 %v901, %v899
        %v920 = vpack.c.b16 %v902, %v900
        %v921 = vpack.c.b16 %v905, %v903
        %v922 = vpack.c.b16 %v906, %v904
        %v923 = vpack.c.b16 %v909, %v907
        %v924 = vpack.c.b16 %v910, %v908
        %v925 = vpack.c.b16 %v913, %v911
        %v926 = vpack.c.b16 %v914, %v912
        %vm939 = vcmask 785408
        %v941 = vsel %vm939, %v866, 0
        %943 = vmatprep.subr.bf16.mxu0 %v916
        %944 = vmatpush1.bf16.msra.mxu0 %v915
        %945 = vmatprep.subr.bf16.mxu0 %v918
        %946 = vmatpush1.bf16.msra.mxu0 %v917
        %947 = vmatprep.subr.bf16.mxu0 %v920
        %948 = vmatpush1.bf16.msra.mxu0 %v919
        %949 = vmatprep.subr.bf16.mxu0 %v922
        %950 = vmatpush1.bf16.msra.mxu0 %v921
        %951 = vmatprep.subr.bf16.mxu0 %v924
        %952 = vmatpush1.bf16.msra.mxu0 %v923
        %953 = vmatprep.subr.bf16.mxu0 %v926
        %954 = vmatpush1.bf16.msra.mxu0 %v925
        %955 = vmatprep.subr.bf16.mxu0 0
        %956 = vmatpush1.bf16.msra.mxu0 0
        %957 = vmatprep.subr.bf16.mxu0 0
        %958 = vmatpush1.bf16.msra.mxu0 0
        %959 = vmatprep.subr.bf16.mxu0 0
        %960 = vmatpush1.bf16.msra.mxu0 0
        %961 = vmatprep.subr.bf16.mxu0 0
        %962 = vmatpush1.bf16.msra.mxu0 0
        %963 = vmatprep.subr.bf16.mxu0 0
        %964 = vmatpush1.bf16.msra.mxu0 0
        %965 = vmatprep.subr.bf16.mxu0 0
        %966 = vmatpush1.bf16.msra.mxu0 0
        %967 = vmatprep.subr.bf16.mxu0 0
        %968 = vmatpush1.bf16.msra.mxu0 0
        %969 = vmatprep.subr.bf16.mxu0 0
        %970 = vmatpush1.bf16.msra.mxu0 0
        %971 = vmatprep.subr.bf16.mxu0 0
        %972 = vmatpush1.bf16.msra.mxu0 0
        %973 = vmatprep.subr.bf16.mxu0 0
        %974 = vmatpush1.bf16.msra.mxu0 0
        %975 = vmatprep.mubr.bf16.mxu0 0
        %976 = vmatmul.mubr.bf16.gmra.mrb[0].mxu0 %v941
        %v977 = vpop.f32.mrb[0].mxu0
        %v978 = vadd.f32 0.0, %v977
        %v979 = vpop.f32.mrb[0].mxu0
        %v980 = vadd.f32 0.0, %v979
        %v981 = vpop.f32.mrb[0].mxu0
        %v982 = vadd.f32 0.0, %v981
        %v983 = vpop.f32.mrb[0].mxu0
        %v984 = vadd.f32 0.0, %v983
        %985 = vdwg.mxu0
        %v986 = vsel %vm860, %v776, 0.0
        %v987 = vrot.slane %v986, 4
        %v988 = vadd.f32 %v986, %v987
        %v989 = vrot.slane %v988, 2
        %v990 = vadd.f32 %v988, %v989
        %v991 = vrot.slane %v990, 1
        %v992 = vadd.f32 %v990, %v991
        %v993 = vsel %vm860, %v777, 0.0
        %v994 = vrot.slane %v993, 4
        %v995 = vadd.f32 %v993, %v994
        %v996 = vrot.slane %v995, 2
        %v997 = vadd.f32 %v995, %v996
        %v998 = vrot.slane %v997, 1
        %v999 = vadd.f32 %v997, %v998
        %v1000 = vrcp.pop 8.0
        %v1001 = vmul.f32 %v992, %v1000
        %v1002 = vmul.f32 %v999, %v1000
        %vm1005 = vcmask 1041409
        %v1006 = vsel %vm1005, %v1002, %v1001
        %1007 = vrot.lane.b32.xlu0 %v1006, 32
        %v1008 = vpop.permute.xlu0 %1007
        %v1010 = vsel %vm860, %v780, %v1008
        %v1011 = vpack.c.bf16 %v1010, %v1010
        %v1012 = vld [vmem:[%s5] sm:$0xf]
        %v1013 = vld [vmem:[%s5 + $0x4] sm:$0xf]
        %v1014 = vld [vmem:[%s5 + $0x8] sm:$0xf]
        %v1015 = vld [vmem:[%s5 + $0xc] sm:$0xf]
        %v1016 = vld [vmem:[%s5 + $0x10] sm:$0xf]
        %v1017 = vld [vmem:[%s5 + $0x14] sm:$0xf]
        %v1018 = vld [vmem:[%s5 + $0x18] sm:$0xf]
        %v1019 = vld [vmem:[%s5 + $0x1c] sm:$0xf]
        %v1028 = vunpack.c.l.b16 %v1012
        %v1029 = vunpack.c.l.b16 %v1013
        %v1030 = vunpack.c.l.b16 %v1014
        %v1031 = vunpack.c.l.b16 %v1015
        %v1032 = vunpack.c.l.b16 %v1016
        %v1033 = vunpack.c.l.b16 %v1017
        %v1034 = vunpack.c.l.b16 %v1018
        %v1035 = vunpack.c.l.b16 %v1019
        %v1036 = vpack.c.b16 %v1029, %v1028
        %v1037 = vpack.c.b16 %v1031, %v1030
        %v1038 = vpack.c.b16 %v1033, %v1032
        %v1039 = vpack.c.b16 %v1035, %v1034
        %v1045 = vsel %vm863, %v1011, 0
        %1047 = vmatprep.subr.bf16.mxu0 0
        %1048 = vmatpush1.bf16.msra.mxu0 %v1036
        %1049 = vmatprep.subr.bf16.mxu0 0
        %1050 = vmatpush1.bf16.msra.mxu0 %v1037
        %1051 = vmatprep.subr.bf16.mxu0 0
        %1052 = vmatpush1.bf16.msra.mxu0 %v1038
        %1053 = vmatprep.subr.bf16.mxu0 0
        %1054 = vmatpush1.bf16.msra.mxu0 %v1039
        %1055 = vmatprep.subr.bf16.mxu0 0
        %1056 = vmatpush1.bf16.msra.mxu0 0
        %1057 = vmatprep.subr.bf16.mxu0 0
        %1058 = vmatpush1.bf16.msra.mxu0 0
        %1059 = vmatprep.subr.bf16.mxu0 0
        %1060 = vmatpush1.bf16.msra.mxu0 0
        %1061 = vmatprep.subr.bf16.mxu0 0
        %1062 = vmatpush1.bf16.msra.mxu0 0
        %1063 = vmatprep.subr.bf16.mxu0 0
        %1064 = vmatpush1.bf16.msra.mxu0 0
        %1065 = vmatprep.subr.bf16.mxu0 0
        %1066 = vmatpush1.bf16.msra.mxu0 0
        %1067 = vmatprep.subr.bf16.mxu0 0
        %1068 = vmatpush1.bf16.msra.mxu0 0
        %1069 = vmatprep.subr.bf16.mxu0 0
        %1070 = vmatpush1.bf16.msra.mxu0 0
        %1071 = vmatprep.subr.bf16.mxu0 0
        %1072 = vmatpush1.bf16.msra.mxu0 0
        %1073 = vmatprep.subr.bf16.mxu0 0
        %1074 = vmatpush1.bf16.msra.mxu0 0
        %1075 = vmatprep.subr.bf16.mxu0 0
        %1076 = vmatpush1.bf16.msra.mxu0 0
        %1077 = vmatprep.subr.bf16.mxu0 0
        %1078 = vmatpush1.bf16.msra.mxu0 0
        %1079 = vmatprep.mubr.bf16.mxu0 0
        %1080 = vmatmul.mubr.bf16.gmra.mrb[0].mxu0 %v1045
        %v1081 = vpop.f32.mrb[0].mxu0
        %v1082 = vadd.f32 0.0, %v1081
        %v1083 = vpop.f32.mrb[0].mxu0
        %v1084 = vpop.f32.mrb[0].mxu0
        %v1085 = vpop.f32.mrb[0].mxu0
        %1086 = vdwg.mxu0
        %v1087 = vld [vmem:[%s6] sm:$0x1]
        %v1089 = vlaneseq
        %v1090 = vshrl.u32 %v1089, 7
        %v1091 = vsub.s32 0, %v1090
        %v1092 = vrot.slane %v1087, %v1091
        %v1094 = vadd.f32 %v1082, %v1092
        %v1095 = vsub.f32 0.0, %v1094
        %v1096 = vmul.f32 %v1095, 1.442695
        %v1097 = vpow.pop %v1096
        %v1098 = vadd.f32 %v1097, 1.0
        %v1099 = vrcp.pop %v1098
        %v1100 = vld [vmem:[%s7] sm:$0x1]
        %v1102 = vlaneseq
        %v1103 = vshrl.u32 %v1102, 7
        %v1104 = vsub.s32 0, %v1103
        %v1105 = vrot.slane %v1100, %v1104
        %1106 = vrot.lane.b32.xlu0 %v1105, 32
        %v1107 = vpop.permute.xlu0 %1106
        %v1109 = vadd.f32 %v1082, %v1107
        %v1110 = vsub.f32 0.0, %v1109
        %v1111 = vmul.f32 %v1110, 1.442695
        %v1112 = vpow.pop %v1111
        %v1113 = vadd.f32 %v1112, 1.0
        %v1114 = vrcp.pop %v1113
        %v1117 = vunpack.c.l.s4 1966171168
        %v1118 = vunpack.c.0.s8 %v1117
        %v1119 = vlaneseq
        %v1120 = vshrl.u32 %v1119, 7
        %v1121 = vsub.s32 %v1118, %v1120
        %v1122 = vrot.slane %v1082, %v1121
        %v1123 = vcombine.high %v1122, %v1122
        %v1125 = vunpack.c.l.s4 1966171168
        %v1126 = vunpack.c.0.s8 %v1125
        %v1127 = vlaneseq
        %v1128 = vshrl.u32 %v1127, 7
        %v1129 = vsub.s32 %v1126, %v1128
        %v1130 = vrot.slane %v1122, %v1129
        %v1132 = vunpack.c.l.s4 1966171168
        %v1133 = vunpack.c.0.s8 %v1132
        %v1134 = vlaneseq
        %v1135 = vshrl.u32 %v1134, 7
        %v1136 = vsub.s32 %v1133, %v1135
        %v1137 = vrot.slane %v1123, %v1136
        %v1138 = vlaneseq
        %v1139 = vshrl.u32 %v1138, 7
        %v1140 = vsub.s32 0, %v1139
        %v1141 = vrot.slane %v1130, %v1140
        %v1142 = vlaneseq
        %v1143 = vshrl.u32 %v1142, 7
        %v1144 = vsub.s32 0, %v1143
        %v1145 = vrot.slane %v1137, %v1144
        %1150 = vrot.lane.b32.xlu0 %v980, 96
        %v1151 = vpop.permute.xlu0 %1150
        %1152 = vrot.lane.b32.xlu0 %v984, 96
        %v1153 = vpop.permute.xlu0 %1152
        %v1156 = vadd.f32 %v1141, %v1151
        %v1157 = vadd.f32 %v1145, %v1153
        %v1158 = vld [vmem:[%s8] sm:$0x1]
        %v1160 = vlaneseq
        %v1161 = vshrl.u32 %v1160, 7
        %v1162 = vsub.s32 0, %v1161
        %v1163 = vrot.slane %v1158, %v1162
        %1164 = vrot.lane.b32.xlu0 %v1163, 64
        %v1165 = vpop.permute.xlu0 %1164
        %v1167 = vadd.f32 %v1156, %v1165
        %v1168 = vadd.f32 %v1157, %v1165
        %v1169 = vsub.f32 0.0, %v1167
        %v1170 = vsub.f32 0.0, %v1168
        %v1171 = vmul.f32 %v1169, 1.442695
        %v1172 = vpow.pop %v1171
        %v1173 = vmul.f32 %v1170, 1.442695
        %v1174 = vpow.pop %v1173
        %v1175 = vadd.f32 %v1172, 1.0
        %v1176 = vadd.f32 %v1174, 1.0
        %v1177 = vrcp.pop %v1175
        %v1178 = vrcp.pop %v1176
        %vm1179 = vcmask 785920
        %v1180 = vsel %vm1179, %v1177, -inf
        %1181 = vmax.xlane.f32.xlu0 %v1180
        %v1182 = vpop.xlane.xlu0 %1181
        %v1183 = vsel %vm1179, %v1178, -inf
        %1184 = vmax.xlane.f32.xlu0 %v1183
        %v1185 = vpop.xlane.xlu0 %1184
        %v1186 = vsub.f32 %v1177, %v1182
        %v1187 = vsub.f32 %v1178, %v1185
        %v1188 = vmul.f32 %v1186, 1.442695
        %v1189 = vpow.pop %v1188
        %v1190 = vmul.f32 %v1187, 1.442695
        %v1191 = vpow.pop %v1190
        %1194 = vrot.lane.b32.xlu0 %v1189, 64
        %v1195 = vpop.permute.xlu0 %1194
        %1196 = vrot.lane.b32.xlu0 %v1191, 64
        %v1197 = vpop.permute.xlu0 %1196
        %v1200 = vsel %vm860, %v1195, 0.0
        %1201 = vadd.xlane.f32.xlu0 %v1200
        %v1202 = vpop.xlane.xlu0 %1201
        %v1203 = vsel %vm860, %v1197, 0.0
        %1204 = vadd.xlane.f32.xlu0 %v1203
        %v1205 = vpop.xlane.xlu0 %1204
        %v1206 = vrcp.pop %v1202
        %v1207 = vrcp.pop %v1205
        %v1208 = vmul.f32 %v1189, %v1206
        %v1209 = vmul.f32 %v1191, %v1207
        %1212 = vrot.lane.b32.xlu0 %v778, 64
        %v1213 = vpop.permute.xlu0 %1212
        %1214 = vrot.lane.b32.xlu0 %v779, 64
        %v1215 = vpop.permute.xlu0 %1214
        %v1218 = vmul.f32 %v1208, %v1213
        %v1219 = vmul.f32 %v1209, %v1215
        %v1220 = vsel %vm1179, %v1218, 0.0
        %v1221 = vrot.slane %v1220, 4
        %v1222 = vadd.f32 %v1220, %v1221
        %v1223 = vrot.slane %v1222, 2
        %v1224 = vadd.f32 %v1222, %v1223
        %v1225 = vrot.slane %v1224, 1
        %v1226 = vadd.f32 %v1224, %v1225
        %v1227 = vsel %vm1179, %v1219, 0.0
        %v1228 = vrot.slane %v1227, 4
        %v1229 = vadd.f32 %v1227, %v1228
        %v1230 = vrot.slane %v1229, 2
        %v1231 = vadd.f32 %v1229, %v1230
        %v1232 = vrot.slane %v1231, 1
        %v1233 = vadd.f32 %v1231, %v1232
        %vm1234 = vcmask 254976
        %v1235 = vsel %vm1234, %v1099, -inf
        %1236 = vmax.xlane.f32.xlu0 %v1235
        %v1237 = vpop.xlane.xlu0 %1236
        %v1238 = vsub.f32 %v1099, %v1237
        %v1239 = vmul.f32 %v1238, 1.442695
        %v1240 = vpow.pop %v1239
        %v1241 = vsel %vm1234, %v1240, 0.0
        %1242 = vadd.xlane.f32.xlu0 %v1241
        %v1243 = vpop.xlane.xlu0 %1242
        %v1244 = vrcp.pop %v1243
        %v1245 = vmul.f32 %v1240, %v1244
        %v1246 = vmul.f32 %v1245, %v781
        %v1249 = vsel %vm1005, %v1233, %v1226
        %1250 = vrot.lane.b32.xlu0 %v1249, 64
        %v1251 = vpop.permute.xlu0 %1250
        %v1253 = vadd.f32 %v1246, %v1251
        %v1254 = vtanh.pop %v1253
        %1256 = vrot.lane.b32.xlu0 %v1254, 32
        %v1257 = vpop.permute.xlu0 %1256
        %v1259 = vmul.f32 %v1114, %v1257
        %v1260 = vpack.c.bf16 %v1259, %v1259
        %v1261 = vld [vmem:[%s11] sm:$0xff]
        %v1262 = vld [vmem:[%s11 + $0x8] sm:$0xff]
        %v1263 = vld [vmem:[%s11 + $0x10] sm:$0xff]
        %v1264 = vld [vmem:[%s11 + $0x18] sm:$0xff]
        %1266 = vrot.lane.b32.xlu0 %v1260, 96
        %v1267 = vpop.permute.xlu0 %1266
        %v1272 = vunpack.c.l.b16 %v1261
        %v1273 = vunpack.c.h.b16 %v1261
        %v1274 = vunpack.c.l.b16 %v1262
        %v1275 = vunpack.c.h.b16 %v1262
        %v1276 = vunpack.c.l.b16 %v1263
        %v1277 = vunpack.c.h.b16 %v1263
        %v1278 = vunpack.c.l.b16 %v1264
        %v1279 = vunpack.c.h.b16 %v1264
        %v1280 = vpack.c.b16 %v1274, %v1272
        %v1281 = vpack.c.b16 %v1275, %v1273
        %v1282 = vpack.c.b16 %v1278, %v1276
        %v1283 = vpack.c.b16 %v1279, %v1277
        %v1289 = vsel %vm860, %v1267, 0
        %1291 = vmatprep.subr.bf16.mxu0 %v1281
        %1292 = vmatpush1.bf16.msra.mxu0 %v1280
        %1293 = vmatprep.subr.bf16.mxu0 %v1283
        %1294 = vmatpush1.bf16.msra.mxu0 %v1282
        %1295 = vmatprep.subr.bf16.mxu0 0
        %1296 = vmatpush1.bf16.msra.mxu0 0
        %1297 = vmatprep.subr.bf16.mxu0 0
        %1298 = vmatpush1.bf16.msra.mxu0 0
        %1299 = vmatprep.subr.bf16.mxu0 0
        %1300 = vmatpush1.bf16.msra.mxu0 0
        %1301 = vmatprep.subr.bf16.mxu0 0
        %1302 = vmatpush1.bf16.msra.mxu0 0
        %1303 = vmatprep.subr.bf16.mxu0 0
        %1304 = vmatpush1.bf16.msra.mxu0 0
        %1305 = vmatprep.subr.bf16.mxu0 0
        %1306 = vmatpush1.bf16.msra.mxu0 0
        %1307 = vmatprep.subr.bf16.mxu0 0
        %1308 = vmatpush1.bf16.msra.mxu0 0
        %1309 = vmatprep.subr.bf16.mxu0 0
        %1310 = vmatpush1.bf16.msra.mxu0 0
        %1311 = vmatprep.subr.bf16.mxu0 0
        %1312 = vmatpush1.bf16.msra.mxu0 0
        %1313 = vmatprep.subr.bf16.mxu0 0
        %1314 = vmatpush1.bf16.msra.mxu0 0
        %1315 = vmatprep.subr.bf16.mxu0 0
        %1316 = vmatpush1.bf16.msra.mxu0 0
        %1317 = vmatprep.subr.bf16.mxu0 0
        %1318 = vmatpush1.bf16.msra.mxu0 0
        %1319 = vmatprep.subr.bf16.mxu0 0
        %1320 = vmatpush1.bf16.msra.mxu0 0
        %1321 = vmatprep.subr.bf16.mxu0 0
        %1322 = vmatpush1.bf16.msra.mxu0 0
        %1323 = vmatprep.mubr.bf16.mxu0 0
        %1324 = vmatmul.mubr.bf16.gmra.mrb[0].mxu0 %v1289
        %v1325 = vpop.f32.mrb[0].mxu0
        %v1326 = vadd.f32 0.0, %v1325
        %v1327 = vpop.f32.mrb[0].mxu0
        %v1328 = vadd.f32 0.0, %v1327
        %v1329 = vpop.f32.mrb[0].mxu0
        %v1330 = vpop.f32.mrb[0].mxu0
        %1331 = vdwg.mxu0
        %v1332 = vld [vmem:[#allocation6] sm:$0xff]
        %v1333 = vld [vmem:[#allocation6 + $0x8] sm:$0xff]
        %v1334 = vunpack.c.l.bf16 %v1332
        %v1335 = vunpack.c.h.bf16 %v1332
        %v1336 = vunpack.c.l.bf16 %v1333
        %v1337 = vunpack.c.h.bf16 %v1333
        %v1338 = vadd.f32 %v978, %v1334
        %v1339 = vadd.f32 %v980, %v1335
        %v1340 = vadd.f32 %v982, %v1336
        %v1341 = vadd.f32 %v984, %v1337
        %v1344 = vcombine.low %v1326, %v1328
        %v1346 = vunpack.c.l.s4 1966171168
        %v1347 = vunpack.c.0.s8 %v1346
        %v1348 = vlaneseq
        %v1349 = vshrl.u32 %v1348, 7
        %v1350 = vsub.s32 %v1347, %v1349
        %v1351 = vrot.slane %v1344, %v1350
        %v1352 = vcombine.high %v1351, %v1351
        %v1354 = vunpack.c.l.s4 1966171168
        %v1355 = vunpack.c.0.s8 %v1354
        %v1356 = vlaneseq
        %v1357 = vshrl.u32 %v1356, 7
        %v1358 = vsub.s32 %v1355, %v1357
        %v1359 = vrot.slane %v1351, %v1358
        %v1361 = vunpack.c.l.s4 1966171168
        %v1362 = vunpack.c.0.s8 %v1361
        %v1363 = vlaneseq
        %v1364 = vshrl.u32 %v1363, 7
        %v1365 = vsub.s32 %v1362, %v1364
        %v1366 = vrot.slane %v1352, %v1365
        %v1367 = vlaneseq
        %v1368 = vshrl.u32 %v1367, 7
        %v1369 = vsub.s32 0, %v1368
        %v1370 = vrot.slane %v1359, %v1369
        %v1371 = vlaneseq
        %v1372 = vshrl.u32 %v1371, 7
        %v1373 = vsub.s32 1, %v1372
        %v1374 = vrot.slane %v1359, %v1373
        %v1375 = vlaneseq
        %v1376 = vshrl.u32 %v1375, 7
        %v1377 = vsub.s32 0, %v1376
        %v1378 = vrot.slane %v1366, %v1377
        %v1379 = vlaneseq
        %v1380 = vshrl.u32 %v1379, 7
        %v1381 = vsub.s32 1, %v1380
        %v1382 = vrot.slane %v1366, %v1381
        %v1387 = vadd.f32 %v1338, %v1370
        %v1388 = vadd.f32 %v1339, %v1374
        %v1389 = vadd.f32 %v1340, %v1378
        %v1390 = vadd.f32 %v1341, %v1382
        %v1391 = vld [vmem:[%s12] sm:$0x3]
        %v1393 = vlaneseq
        %v1394 = vshrl.u32 %v1393, 7
        %v1395 = vsub.s32 0, %v1394
        %v1396 = vrot.slane %v1391, %v1395
        %v1397 = vlaneseq
        %v1398 = vshrl.u32 %v1397, 7
        %v1399 = vsub.s32 1, %v1398
        %v1400 = vrot.slane %v1391, %v1399
        %v1403 = vadd.f32 %v1387, %v1396
        %v1404 = vadd.f32 %v1388, %v1400
        %v1405 = vadd.f32 %v1389, %v1396
        %v1406 = vadd.f32 %v1390, %v1400
        %v1407 = vsub.f32 0.0, %v1403
        %v1408 = vsub.f32 0.0, %v1404
        %v1409 = vsub.f32 0.0, %v1405
        %v1410 = vsub.f32 0.0, %v1406
        %v1411 = vmul.f32 %v1407, 1.442695
        %v1412 = vpow.pop %v1411
        %v1413 = vmul.f32 %v1408, 1.442695
        %v1414 = vpow.pop %v1413
        %v1415 = vmul.f32 %v1409, 1.442695
        %v1416 = vpow.pop %v1415
        %v1417 = vmul.f32 %v1410, 1.442695
        %v1418 = vpow.pop %v1417
        %v1419 = vadd.f32 %v1412, 1.0
        %v1420 = vadd.f32 %v1414, 1.0
        %v1421 = vadd.f32 %v1416, 1.0
        %v1422 = vadd.f32 %v1418, 1.0
        %v1423 = vrcp.pop %v1419
        %v1424 = vrcp.pop %v1420
        %v1425 = vrcp.pop %v1421
        %v1426 = vrcp.pop %v1422
        %v1427 = vtanh.pop %v1404
        %v1428 = vtanh.pop %v1406
        %v1429 = vsel %vm860, %v1424, -inf
        %v1430 = vmax.f32 %v1423, %v1429
        %1431 = vmax.xlane.f32.xlu0 %v1430
        %v1432 = vpop.xlane.xlu0 %1431
        %v1433 = vsel %vm860, %v1426, -inf
        %v1434 = vmax.f32 %v1425, %v1433
        %1435 = vmax.xlane.f32.xlu0 %v1434
        %v1436 = vpop.xlane.xlu0 %1435
        %v1437 = vsub.f32 %v1423, %v1432
        %v1438 = vsub.f32 %v1424, %v1432
        %v1439 = vsub.f32 %v1425, %v1436
        %v1440 = vsub.f32 %v1426, %v1436
        %v1441 = vmul.f32 %v1437, 1.442695
        %v1442 = vpow.pop %v1441
        %v1443 = vmul.f32 %v1438, 1.442695
        %v1444 = vpow.pop %v1443
        %v1445 = vmul.f32 %v1439, 1.442695
        %v1446 = vpow.pop %v1445
        %v1447 = vmul.f32 %v1440, 1.442695
        %v1448 = vpow.pop %v1447
        %v1449 = vsel %vm860, %v1444, 0.0
        %v1450 = vadd.f32 %v1442, %v1449
        %1451 = vadd.xlane.f32.xlu0 %v1450
        %v1452 = vpop.xlane.xlu0 %1451
        %v1453 = vsel %vm860, %v1448, 0.0
        %v1454 = vadd.f32 %v1446, %v1453
        %1455 = vadd.xlane.f32.xlu0 %v1454
        %v1456 = vpop.xlane.xlu0 %1455
        %v1457 = vrcp.pop %v1452
        %v1458 = vrcp.pop %v1456
        %v1459 = vmul.f32 %v1442, %v1457
        %v1460 = vmul.f32 %v1444, %v1457
        %v1461 = vmul.f32 %v1446, %v1458
        %v1462 = vmul.f32 %v1448, %v1458
        %1465 = vrot.lane.b32.xlu0 %v836, 32
        %v1466 = vpop.permute.xlu0 %1465
        %1467 = vrot.lane.b32.xlu0 %v837, 32
        %v1468 = vpop.permute.xlu0 %1467
        %v1471 = vmul.f32 %v1459, %v1466
        %v1472 = vmul.f32 %v1461, %v1468
        %1473 = vrot.lane.b32.xlu0 %v778, 96
        %v1474 = vpop.permute.xlu0 %1473
        %1475 = vrot.lane.b32.xlu0 %v779, 96
        %v1476 = vpop.permute.xlu0 %1475
        %v1479 = vmul.f32 %v1459, %v1474
        %v1480 = vmul.f32 %v1461, %v1476
        %1483 = vrot.lane.b32.xlu0 %v1479, 64
        %v1484 = vpop.permute.xlu0 %1483
        %1485 = vrot.lane.b32.xlu0 %v1480, 64
        %v1486 = vpop.permute.xlu0 %1485
        %v1489 = vadd.f32 %v1471, %v1484
        %v1490 = vadd.f32 %v1472, %v1486
        %1493 = vrot.lane.b32.xlu0 %v842, 64
        %v1494 = vpop.permute.xlu0 %1493
        %1495 = vrot.lane.b32.xlu0 %v843, 64
        %v1496 = vpop.permute.xlu0 %1495
        %v1499 = vmul.f32 %v1459, %v1494
        %v1500 = vmul.f32 %v1461, %v1496
        %1503 = vrot.lane.b32.xlu0 %v1499, 96
        %v1504 = vpop.permute.xlu0 %1503
        %1505 = vrot.lane.b32.xlu0 %v1500, 96
        %v1506 = vpop.permute.xlu0 %1505
        %v1509 = vadd.f32 %v1489, %v1504
        %v1510 = vadd.f32 %v1490, %v1506
        %v1513 = vunpack.c.l.s4 1966171168
        %v1514 = vunpack.c.0.s8 %v1513
        %v1515 = vlaneseq
        %v1516 = vshrl.u32 %v1515, 7
        %v1517 = vsub.s32 %v1514, %v1516
        %v1518 = vrot.slane %v781, %v1517
        %v1519 = vcombine.high %v1518, %v1518
        %v1521 = vunpack.c.l.s4 1966171168
        %v1522 = vunpack.c.0.s8 %v1521
        %v1523 = vlaneseq
        %v1524 = vshrl.u32 %v1523, 7
        %v1525 = vsub.s32 %v1522, %v1524
        %v1526 = vrot.slane %v1518, %v1525
        %v1528 = vunpack.c.l.s4 1966171168
        %v1529 = vunpack.c.0.s8 %v1528
        %v1530 = vlaneseq
        %v1531 = vshrl.u32 %v1530, 7
        %v1532 = vsub.s32 %v1529, %v1531
        %v1533 = vrot.slane %v1519, %v1532
        %v1534 = vlaneseq
        %v1535 = vshrl.u32 %v1534, 7
        %v1536 = vsub.s32 0, %v1535
        %v1537 = vrot.slane %v1526, %v1536
        %v1538 = vlaneseq
        %v1539 = vshrl.u32 %v1538, 7
        %v1540 = vsub.s32 0, %v1539
        %v1541 = vrot.slane %v1533, %v1540
        %v1544 = vmul.f32 %v1460, %v1537
        %v1545 = vmul.f32 %v1462, %v1541
        %1548 = vrot.lane.b32.xlu0 %v1544, 32
        %v1549 = vpop.permute.xlu0 %1548
        %1550 = vrot.lane.b32.xlu0 %v1545, 32
        %v1551 = vpop.permute.xlu0 %1550
        %v1554 = vadd.f32 %v1509, %v1549
        %v1555 = vadd.f32 %v1510, %v1551
        %1558 = vrot.lane.b32.xlu0 %v1427, 64
        %v1559 = vpop.permute.xlu0 %1558
        %1560 = vrot.lane.b32.xlu0 %v1428, 64
        %v1561 = vpop.permute.xlu0 %1560
        %v1564 = vmul.f32 %v1459, %v1559
        %v1565 = vmul.f32 %v1461, %v1561
        %1568 = vrot.lane.b32.xlu0 %v1564, 32
        %v1569 = vpop.permute.xlu0 %1568
        %1570 = vrot.lane.b32.xlu0 %v1565, 32
        %v1571 = vpop.permute.xlu0 %1570
        %v1574 = vadd.f32 %v1554, %v1569
        %v1575 = vadd.f32 %v1555, %v1571
        %v1576 = vtanh.pop %v1574
        %v1577 = vtanh.pop %v1575
        %v1578 = vmul.f32 %v1424, %v1576
        %v1579 = vmul.f32 %v1426, %v1577
        %1582 = vrot.lane.b32.xlu0 %v1578, 96
        %v1583 = vpop.permute.xlu0 %1582
        %1584 = vrot.lane.b32.xlu0 %v1579, 96
        %v1585 = vpop.permute.xlu0 %1584
        %1588 = vst.msk [vmem:[#allocation2] sm:$0xff] %vm860, %v1583
        %1589 = vst.msk [vmem:[#allocation2 + $0x8] sm:$0xff] %vm860, %v1585
        %1592 = vrot.lane.b32.xlu0 %v1574, 96
        %v1593 = vpop.permute.xlu0 %1592
        %1594 = vrot.lane.b32.xlu0 %v1575, 96
        %v1595 = vpop.permute.xlu0 %1594
        %1598 = vst.msk [vmem:[#allocation3] sm:$0xff] %vm860, %v1593
        %1599 = vst.msk [vmem:[#allocation3 + $0x8] sm:$0xff] %vm860, %v1595
        %1601 = vrot.lane.b32.xlu0 %v1259, 96
        %v1602 = vpop.permute.xlu0 %1601
        %1604 = vst.msk [vmem:[#allocation4] sm:$0x3] %vm1234, %v1602
        %1605 = vst.msk [vmem:[#allocation5] sm:$0x3] %vm1234, %v1253
        %p1606 = scmp.eq.s32.totalorder %s37, 1
        // Predicated region
        $region93: #{slstm_forward.1} parent=87 // pred_check
          %p1607 = pneg %p1606
        $region94: #{slstm_forward.1} parent=87 // pred_check_branch
          %1609 = sbr.rel (%p1607) target = $region96
        $region95: #{slstm_forward.1} parent=87 // pred_region
          %vm1610 = vcmask 523520
          %v1611 = vsel %vm1610, %v1578, 0.0
          %v1612 = vrot.slane %v1611, 4
          %v1613 = vadd.f32 %v1611, %v1612
          %v1614 = vrot.slane %v1613, 2
          %v1615 = vadd.f32 %v1613, %v1614
          %v1616 = vrot.slane %v1615, 1
          %v1617 = vadd.f32 %v1615, %v1616
          %v1618 = vsel %vm1610, %v1579, 0.0
          %v1619 = vrot.slane %v1618, 4
          %v1620 = vadd.f32 %v1618, %v1619
          %v1621 = vrot.slane %v1620, 2
          %v1622 = vadd.f32 %v1620, %v1621
          %v1623 = vrot.slane %v1622, 1
          %v1624 = vadd.f32 %v1622, %v1623
          %v1625 = vmul.f32 %v1617, %v1000
          %v1626 = vmul.f32 %v1624, %v1000
          %v1629 = vsel %vm1005, %v1626, %v1625
          %1630 = vrot.lane.b32.xlu0 %v1629, 96
          %v1631 = vpop.permute.xlu0 %1630
          %v1633 = vsel %vm860, %v1631, %v1259
          %v1634 = vpack.c.bf16 %v1633, %v1633
          %v1635 = vld [vmem:[%s13] sm:$0xf]
          %v1636 = vld [vmem:[%s13 + $0x4] sm:$0xf]
          %v1637 = vld [vmem:[%s13 + $0x8] sm:$0xf]
          %v1638 = vld [vmem:[%s13 + $0xc] sm:$0xf]
          %v1639 = vld [vmem:[%s13 + $0x10] sm:$0xf]
          %v1640 = vld [vmem:[%s13 + $0x14] sm:$0xf]
          %v1641 = vld [vmem:[%s13 + $0x18] sm:$0xf]
          %v1642 = vld [vmem:[%s13 + $0x1c] sm:$0xf]
          %v1643 = vld [vmem:[%s14] sm:$0x1]
          %v1645 = vlaneseq
          %v1646 = vshrl.u32 %v1645, 7
          %v1647 = vsub.s32 0, %v1646
          %v1648 = vrot.slane %v1643, %v1647
          %v1658 = vunpack.c.l.b16 %v1635
          %v1659 = vunpack.c.l.b16 %v1636
          %v1660 = vunpack.c.l.b16 %v1637
          %v1661 = vunpack.c.l.b16 %v1638
          %v1662 = vunpack.c.l.b16 %v1639
          %v1663 = vunpack.c.l.b16 %v1640
          %v1664 = vunpack.c.l.b16 %v1641
          %v1665 = vunpack.c.l.b16 %v1642
          %v1666 = vpack.c.b16 %v1659, %v1658
          %v1667 = vpack.c.b16 %v1661, %v1660
          %v1668 = vpack.c.b16 %v1663, %v1662
          %v1669 = vpack.c.b16 %v1665, %v1664
          %v1675 = vsel %vm863, %v1634, 0
          %1677 = vmatprep.subr.bf16.mxu0 0
          %1678 = vmatpush1.bf16.msra.mxu0 %v1666
          %1679 = vmatprep.subr.bf16.mxu0 0
          %1680 = vmatpush1.bf16.msra.mxu0 %v1667
          %1681 = vmatprep.subr.bf16.mxu0 0
          %1682 = vmatpush1.bf16.msra.mxu0 %v1668
          %1683 = vmatprep.subr.bf16.mxu0 0
          %1684 = vmatpush1.bf16.msra.mxu0 %v1669
          %1685 = vmatprep.subr.bf16.mxu0 0
          %1686 = vmatpush1.bf16.msra.mxu0 0
          %1687 = vmatprep.subr.bf16.mxu0 0
          %1688 = vmatpush1.bf16.msra.mxu0 0
          %1689 = vmatprep.subr.bf16.mxu0 0
          %1690 = vmatpush1.bf16.msra.mxu0 0
          %1691 = vmatprep.subr.bf16.mxu0 0
          %1692 = vmatpush1.bf16.msra.mxu0 0
          %1693 = vmatprep.subr.bf16.mxu0 0
          %1694 = vmatpush1.bf16.msra.mxu0 0
          %1695 = vmatprep.subr.bf16.mxu0 0
          %1696 = vmatpush1.bf16.msra.mxu0 0
          %1697 = vmatprep.subr.bf16.mxu0 0
          %1698 = vmatpush1.bf16.msra.mxu0 0
          %1699 = vmatprep.subr.bf16.mxu0 0
          %1700 = vmatpush1.bf16.msra.mxu0 0
          %1701 = vmatprep.subr.bf16.mxu0 0
          %1702 = vmatpush1.bf16.msra.mxu0 0
          %1703 = vmatprep.subr.bf16.mxu0 0
          %1704 = vmatpush1.bf16.msra.mxu0 0
          %1705 = vmatprep.subr.bf16.mxu0 0
          %1706 = vmatpush1.bf16.msra.mxu0 0
          %1707 = vmatprep.subr.bf16.mxu0 0
          %1708 = vmatpush1.bf16.msra.mxu0 0
          %1709 = vmatprep.mubr.bf16.mxu0 0
          %1710 = vmatmul.mubr.bf16.gmra.mrb[0].mxu0 %v1675
          %v1711 = vpop.f32.mrb[0].mxu0
          %v1712 = vadd.f32 %v1648, %v1711
          %v1713 = vpop.f32.mrb[0].mxu0
          %v1714 = vpop.f32.mrb[0].mxu0
          %v1715 = vpop.f32.mrb[0].mxu0
          %1716 = vdwg.mxu0
          %v1717 = vpack.c.bf16 %v1712, %v1712
          %v1718 = vld [vmem:[%s15] sm:$0xf]
          %v1719 = vld [vmem:[%s15 + $0x4] sm:$0xf]
          %v1720 = vld [vmem:[%s15 + $0x8] sm:$0xf]
          %v1721 = vld [vmem:[%s15 + $0xc] sm:$0xf]
          %v1722 = vld [vmem:[%s16] sm:$0x1]
          %v1724 = vlaneseq
          %v1725 = vshrl.u32 %v1724, 7
          %v1726 = vsub.s32 0, %v1725
          %v1727 = vrot.slane %v1722, %v1726
          %v1733 = vunpack.c.l.b16 %v1718
          %v1734 = vunpack.c.l.b16 %v1719
          %v1735 = vunpack.c.l.b16 %v1720
          %v1736 = vunpack.c.l.b16 %v1721
          %v1737 = vpack.c.b16 %v1734, %v1733
          %v1738 = vpack.c.b16 %v1736, %v1735
          %v1742 = vsel %vm860, %v1717, 0
          %1744 = vmatprep.subr.bf16.mxu0 0
          %1745 = vmatpush1.bf16.msra.mxu0 %v1737
          %1746 = vmatprep.subr.bf16.mxu0 0
          %1747 = vmatpush1.bf16.msra.mxu0 %v1738
          %1748 = vmatprep.subr.bf16.mxu0 0
          %1749 = vmatpush1.bf16.msra.mxu0 0
          %1750 = vmatprep.subr.bf16.mxu0 0
          %1751 = vmatpush1.bf16.msra.mxu0 0
          %1752 = vmatprep.subr.bf16.mxu0 0
          %1753 = vmatpush1.bf16.msra.mxu0 0
          %1754 = vmatprep.subr.bf16.mxu0 0
          %1755 = vmatpush1.bf16.msra.mxu0 0
          %1756 = vmatprep.subr.bf16.mxu0 0
          %1757 = vmatpush1.bf16.msra.mxu0 0
          %1758 = vmatprep.subr.bf16.mxu0 0
          %1759 = vmatpush1.bf16.msra.mxu0 0
          %1760 = vmatprep.subr.bf16.mxu0 0
          %1761 = vmatpush1.bf16.msra.mxu0 0
          %1762 = vmatprep.subr.bf16.mxu0 0
          %1763 = vmatpush1.bf16.msra.mxu0 0
          %1764 = vmatprep.subr.bf16.mxu0 0
          %1765 = vmatpush1.bf16.msra.mxu0 0
          %1766 = vmatprep.subr.bf16.mxu0 0
          %1767 = vmatpush1.bf16.msra.mxu0 0
          %1768 = vmatprep.subr.bf16.mxu0 0
          %1769 = vmatpush1.bf16.msra.mxu0 0
          %1770 = vmatprep.subr.bf16.mxu0 0
          %1771 = vmatpush1.bf16.msra.mxu0 0
          %1772 = vmatprep.subr.bf16.mxu0 0
          %1773 = vmatpush1.bf16.msra.mxu0 0
          %1774 = vmatprep.subr.bf16.mxu0 0
          %1775 = vmatpush1.bf16.msra.mxu0 0
          %1776 = vmatprep.mubr.bf16.mxu0 0
          %1777 = vmatmul.mubr.bf16.gmra.mrb[0].mxu0 %v1742
          %v1778 = vpop.f32.mrb[0].mxu0
          %v1779 = vadd.f32 %v1727, %v1778
          %v1780 = vpop.f32.mrb[0].mxu0
          %v1781 = vpop.f32.mrb[0].mxu0
          %v1782 = vpop.f32.mrb[0].mxu0
          %1783 = vdwg.mxu0
          %vm1784 = vcmask 25600
          %v1785 = vsel %vm1784, %v1779, -inf
          %1786 = vmax.xlane.f32.xlu0 %v1785
          %v1787 = vpop.xlane.xlu0 %1786
          %v1788 = vsub.f32 %v1779, %v1787
          %v1789 = vmul.f32 %v1788, 1.442695
          %v1790 = vpow.pop %v1789
          %v1791 = vsel %vm1784, %v1790, 0.0
          %1792 = vadd.xlane.f32.xlu0 %v1791
          %v1793 = vpop.xlane.xlu0 %1792
          %v1794 = vlog2.pop %v1793
          %v1795 = vmul.f32 %v1794, 0.6931472
          %v1796 = vsub.f32 %v1788, %v1795
          %1797 = vst.msk [vmem:[#allocation7] sm:$0x3] %vm1784, %v1796
          %1798 = vst.msk [vmem:[#allocation9] sm:$0x3] %vm1234, %v1602
        $region96: #{slstm_forward.1} parent=87 // pred_fallthru
          _
        // Predicated region
        $region97: #{slstm_forward.1} parent=87 // pred_check
          %p1799 = pneg %p444
        $region98: #{slstm_forward.1} parent=87 // pred_check_branch
          %1801 = sbr.rel (%p1799) target = $region100
        $region99: #{slstm_forward.1} parent=87 // pred_region
          %s1803 = ssub.s32 32, 32
          %1804 = vsyncadd [#allocation8], %s1803
          %s1805 = smul.addr %s36, 32
          %s1806 = scalar_lea.hbm %s17, %s1805
          %s1808 = sshll.u32 [#allocation7], 4
          %s1809 = int_to_ptr.vmem [resolvable:$true] %s1808
          %1811 = dma.vmem_to_hbm [thread:$0]  %s1809, 32, %s1806, [#allocation8]
        $region100: #{slstm_forward.1} parent=87 // pred_fallthru
          _
        // Predicated region
        $region101: #{slstm_forward.1} parent=87 // pred_check
          %p1812 = pneg %p470
        $region102: #{slstm_forward.1} parent=87 // pred_check_branch
          %1814 = sbr.rel (%p1812) target = $region104
        $region103: #{slstm_forward.1} parent=87 // pred_region
          %s1816 = ssub.s32 32, 32
          %1817 = vsyncadd [#allocation10], %s1816
          %s1818 = smul.addr %s36, 32
          %s1819 = scalar_lea.hbm %s18, %s1818
          %s1821 = sshll.u32 [#allocation9], 4
          %s1822 = int_to_ptr.vmem [resolvable:$true] %s1821
          %1824 = dma.vmem_to_hbm [thread:$0]  %s1822, 32, %s1819, [#allocation10]
        $region104: #{slstm_forward.1} parent=87 // pred_fallthru
          _
        // Predicated region
        $region105: #{slstm_forward.1} parent=87 // pred_check
          %p1825 = pneg %p444
        $region106: #{slstm_forward.1} parent=87 // pred_check_branch
          %1827 = sbr.rel (%p1825) target = $region108
        $region107: #{slstm_forward.1} parent=87 // pred_region
          %1828 = dma.done [#allocation8], 32
        $region108: #{slstm_forward.1} parent=87 // pred_fallthru
          _
        // Predicated region
        $region109: #{slstm_forward.1} parent=87 // pred_check
          %p1829 = pneg %p470
        $region110: #{slstm_forward.1} parent=87 // pred_check_branch
          %1831 = sbr.rel (%p1829) target = $region112
        $region111: #{slstm_forward.1} parent=87 // pred_region
          %1832 = dma.done [#allocation10], 32
        $region112: #{slstm_forward.1} parent=87 // pred_fallthru
          _
      $region88: #{slstm_forward.1} parent=5 // pred_fallthru
        _
      %p1833 = scmp.le.s32.totalorder 2, %s27
      // Predicated region
      $region113: #{slstm_forward.1} parent=5 // pred_check
        %p1834 = pneg %p1833
      $region114: #{slstm_forward.1} parent=5 // pred_check_branch
        %1836 = sbr.rel (%p1834) target = $region116
      $region115: #{slstm_forward.1} parent=5 // pred_region
        %s1837 = ssub.s32 %s27, 2
      $region116: #{slstm_forward.1} parent=5 // pred_fallthru
        _
    $region6: #{slstm_forward.1} parent=1 // loop_footer
      %s31 = sadd.s32 1, %s27
    $region7: #{slstm_forward.1} parent=1 // loop_footer_branch
      %26 = sbr.rel target = $region3
    $region8: #{slstm_forward.1} parent=1 // loop_exit
      _
    %1838 = vsyncpa [#allocation8], 1
    %s1839 = scalar_lea.sflag [#allocation8], 1
    %1840 = vsyncpa %s1839, 1
    %1841 = vsyncpa [#allocation10], 1

</llo_original>
